<compile_context>
chip_gen: v5e
topology: v5e:2x2
jax: 0.10.0
libtpu: 0.0.40
codegen_flags: <defaults>
</compile_context>

<pallas_src>
import jax
import jax.numpy as jnp
from jax.experimental import pallas as pl
from jax.experimental.pallas import tpu as pltpu


def _round_up(n, m):
    return ((n + m - 1) // m) * m


def _device_kind():
    try:
        return jax.devices()[0].device_kind.lower()
    except Exception:
        return ""


def _vmem_cap_bytes():
    # Clamp vmem_limit_bytes to the physical per-core VMEM (v7x has 64 MiB).
    try:
        phys = int(pltpu.get_tpu_info().vmem_capacity_bytes)
    except Exception:
        phys = 64 << 20  # most conservative (v7x per-TensorCore VMEM)
    return int(0.85 * phys)


def _dimension_semantics(num_steps):
    kind = _device_kind()
    if ("v7" in kind and num_steps >= 2 and num_steps % 2 == 0
            and hasattr(pltpu, "CORE_PARALLEL")):
        # v7x: shard the batch grid across the two TensorCores.
        return (pltpu.CORE_PARALLEL,)
    return ("parallel",)


# -----------------------------------------------------------------------------
# Kernel
# -----------------------------------------------------------------------------
def resmlp2_kernel(
    x_ref,                 # [TB, Din]         matmul dtype (f32 or bf16)
    w0_ref, b0_ref,        # [Din, Hp], [1, Hp]  (b0 f32)
    w1_ref, w2_ref,        # [L, Hp, Hp] each    (norm1/norm2 folded in)
    vec_ref,               # [L, 16, Hp] packed per-layer vectors (ew dtype):
                           #   rows: b1, b2, a1{g2,f2,hb}, a2{g2,f2,hb}, s{g2,f2,hb}
    wout_ref, bout_ref,    # [Hp, Dp], [1, Dp]   (final Affine folded in)
    o_ref,                 # [TB, Dp] f32
):
    num_layers = w1_ref.shape[0]
    mm_dtype = w0_ref.dtype        # matmul operand dtype (MXU), f32 accumulation
    ew_dtype = vec_ref.dtype       # Supact elementwise dtype (bf16 on v6e/v7x)
    f32 = jnp.float32

    def supact(v, g2, f2, hb):
        # (gamma + sigmoid(beta*v)*(1-gamma)) * v, reparameterized to a single
        # EUP tanh:  (g2 + f2*tanh(hb*v)) * v  with g2=0.5*(1+gamma),
        # f2=0.5*(1-gamma), hb=0.5*beta (precomputed at prep time).
        ve = v.astype(ew_dtype)
        return (g2 + f2 * jnp.tanh(hb * ve)) * ve

    # Input projection (x is already in the matmul dtype).
    h = jnp.dot(x_ref[...], w0_ref[...],
                preferred_element_type=f32) + b0_ref[...]

    def layer(l, h):
        vecs = vec_ref[l]                              # [16, Hp], ew dtype
        b1, b2 = vecs[0:1, :], vecs[1:2, :]
        a1g2, a1f2, a1hb = vecs[2:3, :], vecs[3:4, :], vecs[4:5, :]
        a2g2, a2f2, a2hb = vecs[5:6, :], vecs[6:7, :], vecs[7:8, :]
        sg2, sf2, shb = vecs[8:9, :], vecs[9:10, :], vecs[10:11, :]

        xskip = h
        # o1 = Supact1(Linear1(Affine1(h)))      (Affine1 folded into w1/b1)
        t = jnp.dot(h.astype(mm_dtype), w1_ref[l],
                    preferred_element_type=f32) + b1
        t = supact(t, a1g2, a1f2, a1hb)
        # o2 = Supact2(Linear2(Affine2(o1))) + xskip  (skip add kept in f32)
        t = jnp.dot(t.astype(mm_dtype), w2_ref[l],
                    preferred_element_type=f32) + b2
        t = supact(t, a2g2, a2f2, a2hb).astype(f32) + xskip
        # trailing per-layer Supact from the Sequential
        return supact(t, sg2, sf2, shb).astype(f32)

    h = jax.lax.fori_loop(0, num_layers, layer, h,
                          unroll=True if num_layers <= 8 else False)

    # Output projection (+ folded final Affine).
    out = jnp.dot(h.astype(mm_dtype), wout_ref[...],
                  preferred_element_type=f32) + bout_ref[...]
    o_ref[...] = out.astype(o_ref.dtype)


# -----------------------------------------------------------------------------
# Param preparation: fold Affines, reparameterize Supact, pack & pad to lanes.
# -----------------------------------------------------------------------------
def prepare_params(p, weight_dtype=jnp.float32, elementwise_dtype=None):
    f32 = jnp.float32
    Din, H = p["w0"].shape
    L = p["w1"].shape[0]
    Dout = p["wout"].shape[1]
    Hp = _round_up(H, 128)
    Dp = _round_up(Dout, 128)

    if elementwise_dtype is None:
        # bf16 VPU/EUP path exists on v6e/v7x; keep f32 elementwise on v5*.
        elementwise_dtype = f32 if "v5" in _device_kind() else weight_dtype

    # Fold scalar Affine (norm1/norm2) into the following Linear:
    #   (g*h + b) @ W + bias  ==  h @ (g*W) + (bias + b * W.sum(axis=in))
    w1f = p["n1g"][:, None, None] * p["w1"]
    b1f = p["b1"] + p["n1b"][:, None] * jnp.sum(p["w1"], axis=1)
    w2f = p["n2g"][:, None, None] * p["w2"]
    b2f = p["b2"] + p["n2b"][:, None] * jnp.sum(p["w2"], axis=1)
    # Fold the trailing Affine into the output Linear.
    woutf = p["affg"][0] * p["wout"]
    boutf = p["affg"][0] * p["bout"] + p["affb"][0]

    # Supact reparameterization (single tanh on the EUP):
    #   (g + sigmoid(b*v)*(1-g))*v == (g2 + f2*tanh(hb*v))*v
    def sup(g, b):
        return 0.5 * (1.0 + g), 0.5 * (1.0 - g), 0.5 * b

    a1g2, a1f2, a1hb = sup(p["a1g"], p["a1b"])
    a2g2, a2f2, a2hb = sup(p["a2g"], p["a2b"])
    sg2, sf2, shb = sup(p["sg"], p["sb"])

    def pad2(a, r, c):  # zero-pad last two dims to (r, c)
        out = jnp.zeros(a.shape[:-2] + (r, c), f32)
        return out.at[..., : a.shape[-2], : a.shape[-1]].set(a.astype(f32))

    # Pack all per-layer [L, H] vectors into a single [L, 16, Hp] slab.
    # Padded lanes stay zero: v=0 there (zero-padded weights/biases) and
    # (g2 + f2*tanh(0))*0 == 0, so padding is provably inert.
    rows = [b1f, b2f, a1g2, a1f2, a1hb, a2g2, a2f2, a2hb, sg2, sf2, shb]
    vec = jnp.zeros((L, 16, Hp), f32)
    for i, r in enumerate(rows):
        vec = vec.at[:, i, :H].set(r.astype(f32))

    return {
        "w0":   pad2(p["w0"], Din, Hp).astype(weight_dtype),
        "b0":   pad2(p["b0"], 1, Hp),
        "w1":   pad2(w1f, Hp, Hp).astype(weight_dtype),
        "w2":   pad2(w2f, Hp, Hp).astype(weight_dtype),
        "vec":  vec.astype(elementwise_dtype),
        "wout": pad2(woutf, Hp, Dp).astype(weight_dtype),
        "bout": pad2(boutf, 1, Dp),
        "out_dim": Dout,
    }


_PARAM_ORDER = ["w0", "b0", "w1", "w2", "vec", "wout", "bout"]


# -----------------------------------------------------------------------------
# Wrapper
# -----------------------------------------------------------------------------
def resmlp2_forward(x, prep, *, block_b=None):
    B, Din = x.shape
    Dout = prep["out_dim"]
    Hp = prep["w0"].shape[1]
    Dp = prep["wout"].shape[1]
    L = prep["w1"].shape[0]
    mm_dtype = prep["w0"].dtype

    # Larger batch tiles amortize the ~0.35us/grid-step overhead; only the
    # activation tile grows with TB (weights are resident).
    if block_b is None:
        block_b = 512
    b_align = 16 if mm_dtype == jnp.bfloat16 else 8
    TB = block_b if B >= block_b else _round_up(B, b_align)
    Bp = _round_up(B, TB)

    x = x.astype(mm_dtype)          # stream x in the matmul dtype
    if Bp != B:
        x = jnp.pad(x, ((0, Bp - B), (0, 0)))

    grid = (Bp // TB,)
    dim_sem = _dimension_semantics(grid[0])
    vmem_cap = _vmem_cap_bytes()

    def resident_spec(a, single_buffer):
        nd = a.ndim
        kwargs = {}
        if single_buffer:
            # Constant index_map => fetched once; single-buffer halves VMEM.
            kwargs["pipeline_mode"] = pl.Buffered(1)
        return pl.BlockSpec(a.shape, lambda i, nd=nd: (0,) * nd, **kwargs)

    def run(single_buffer, param_args):
        param_bytes = sum(int(a.size) * a.dtype.itemsize for a in param_args)
        param_mult = 1 if single_buffer else 2
        tile_bytes = 2 * (TB * Din * x.dtype.itemsize + TB * Dp * 4)  # streamed
        act_bytes = 8 * TB * Hp * 4                                   # temporaries
        vmem_limit = int(min(vmem_cap,
                             max(32 << 20,
                                 param_mult * param_bytes + tile_bytes
                                 + act_bytes + (4 << 20))))

        flops = 2 * Bp * (Din * Hp + 2 * L * Hp * Hp + Hp * Dp)
        cost = pl.CostEstimate(
            flops=int(flops),
            transcendentals=int(3 * L * Bp * Hp),
            bytes_accessed=int(Bp * Din * x.dtype.itemsize + Bp * Dp * 4
                               + param_bytes),
        )

        in_specs = ([pl.BlockSpec((TB, Din), lambda i: (i, 0))]
                    + [resident_spec(a, single_buffer) for a in param_args])
        out_specs = pl.BlockSpec((TB, Dp), lambda i: (i, 0))

        out = pl.pallas_call(
            resmlp2_kernel,
            out_shape=jax.ShapeDtypeStruct((Bp, Dp), jnp.float32),
            grid=grid,
            in_specs=in_specs,
            out_specs=out_specs,
            compiler_params=pltpu.CompilerParams(
                dimension_semantics=dim_sem,
                vmem_limit_bytes=vmem_limit),
            cost_estimate=cost,
        )(x, *param_args)
        return jax.block_until_ready(out)

    # Attempt order: (Buffered(1) params, as-prepared dtypes) first, then
    # conservative fallbacks (default double-buffering / f32 elementwise).
    base_args = [prep[k] for k in _PARAM_ORDER]
    use_buffered = hasattr(pl, "Buffered")
    attempts = [(use_buffered, base_args)]
    if use_buffered:
        attempts.append((False, base_args))
    if prep["vec"].dtype != jnp.float32:
        f32_vec_args = [prep[k].astype(jnp.float32) if k == "vec" else prep[k]
                        for k in _PARAM_ORDER]
        attempts.append((use_buffered, f32_vec_args))
        if use_buffered:
            attempts.append((False, f32_vec_args))

    out = None
    last_err = None
    for single_buffer, args in attempts:
        try:
            out = run(single_buffer, args)
            break
        except Exception as e:  # fall back to a more conservative config
            last_err = e
    if out is None:
        raise last_err

    return out[:B, :Dout]


# -----------------------------------------------------------------------------
# Pure-JAX reference (op-for-op equal to the torch module) + param init.
# -----------------------------------------------------------------------------
def resmlp2_reference(x, params):
    hp = jax.lax.Precision.HIGHEST

    def supact(v, gamma, beta):
        return (gamma + jax.nn.sigmoid(beta * v) * (1.0 - gamma)) * v

    h = jnp.dot(x, params["w0"], precision=hp) + params["b0"]
    L = params["w1"].shape[0]
    for l in range(L):
        xskip = h
        t = h * params["n1g"][l] + params["n1b"][l]
        t = jnp.dot(t, params["w1"][l], precision=hp) + params["b1"][l]
        t = supact(t, params["a1g"][l], params["a1b"][l])
        t = t * params["n2g"][l] + params["n2b"][l]
        t = jnp.dot(t, params["w2"][l], precision=hp) + params["b2"][l]
        t = supact(t, params["a2g"][l], params["a2b"][l]) + xskip
        h = supact(t, params["sg"][l], params["sb"][l])
    out = jnp.dot(h, params["wout"], precision=hp) + params["bout"]
    return out * params["affg"][0] + params["affb"][0]


def init_params(key, input_dim, output_dim, int_dim, n_layer):
    ks = jax.random.split(key, 16)
    f32 = jnp.float32
    H, L = int_dim, n_layer
    return {
        "w0":  0.2 * jax.random.normal(ks[0], (input_dim, H), f32),
        "b0":  0.1 * jax.random.normal(ks[1], (1, H), f32),
        "w1":  0.2 * jax.random.normal(ks[2], (L, H, H), f32),
        "b1":  0.1 * jax.random.normal(ks[3], (L, H), f32),
        "w2":  0.2 * jax.random.normal(ks[4], (L, H, H), f32),
        "b2":  0.1 * jax.random.normal(ks[5], (L, H), f32),
        # Supact params (torch init gamma=1, beta=0; perturbed to exercise math)
        "a1g": 1.0 + 0.1 * jax.random.normal(ks[6], (L, H), f32),
        "a1b": 0.1 * jax.random.normal(ks[7], (L, H), f32),
        "a2g": 1.0 + 0.1 * jax.random.normal(ks[8], (L, H), f32),
        "a2b": 0.1 * jax.random.normal(ks[9], (L, H), f32),
        "sg":  1.0 + 0.1 * jax.random.normal(ks[10], (L, H), f32),
        "sb":  0.1 * jax.random.normal(ks[11], (L, H), f32),
        # Scalar Affine params (per ResBlock norm1/norm2)
        "n1g": 1.0 + 0.1 * jax.random.normal(ks[12], (L,), f32),
        "n1b": 0.1 * jax.random.normal(ks[13], (L,), f32),
        "n2g": 1.0 + 0.1 * jax.random.normal(ks[14], (L,), f32),
        "n2b": 0.1 * jax.random.normal(ks[15], (L,), f32),
        "wout": 0.2 * jax.random.normal(jax.random.fold_in(key, 100),
                                        (H, output_dim), f32),
        "bout": 0.1 * jax.random.normal(jax.random.fold_in(key, 101),
                                        (1, output_dim), f32),
        "affg": jnp.array([1.1], f32),
        "affb": jnp.array([0.05], f32),
    }


if __name__ == "__main__":
    B, input_dim, int_dim, output_dim, n_layer = 8, 8, 32, 4, 2

    key = jax.random.PRNGKey(0)
    kx, kp = jax.random.split(key)
    x = jax.random.normal(kx, (B, input_dim), jnp.float32)
    params = init_params(kp, input_dim, output_dim, int_dim, n_layer)

    ref = jax.block_until_ready(resmlp2_reference(x, params))

    # f32 path (f32 weights + f32 elementwise): numerically equivalent to the
    # torch module up to tanh-vs-sigmoid ULPs; tight tolerance.
    prep32 = prepare_params(params, weight_dtype=jnp.float32,
                            elementwise_dtype=jnp.float32)
    out32 = resmlp2_forward(x, prep32)
    assert out32.shape == (B, output_dim), out32.shape
    err32 = float(jnp.max(jnp.abs(out32 - ref)))
    assert jnp.allclose(out32, ref, rtol=1e-3, atol=1e-3), f"f32 max abs err {err32}"

    # bf16-weight path (MXU-native; bf16 Supact on v6e/v7x): looser tolerance.
    prep16 = prepare_params(params, weight_dtype=jnp.bfloat16)
    out16 = resmlp2_forward(x, prep16)
    assert out16.shape == (B, output_dim), out16.shape
    err16 = float(jnp.max(jnp.abs(out16 - ref)))
    assert jnp.allclose(out16, ref, rtol=1e-1, atol=1e-1), f"bf16 max abs err {err16}"

    print("KERNEL_OK")
</pallas_src>

<mosaic_0001>
module attributes {stable_mosaic.version = 11 : i64} {
  func.func @resmlp2_kernel(%arg0: i32, %arg1: memref<8x8xf32, #tpu.memory_space<vmem>>, %arg2: memref<8x128xf32, #tpu.memory_space<vmem>>, %arg3: memref<1x128xf32, #tpu.memory_space<vmem>>, %arg4: memref<2x128x128xf32, #tpu.memory_space<vmem>>, %arg5: memref<2x128x128xf32, #tpu.memory_space<vmem>>, %arg6: memref<2x16x128xf32, #tpu.memory_space<vmem>>, %arg7: memref<128x128xf32, #tpu.memory_space<vmem>>, %arg8: memref<1x128xf32, #tpu.memory_space<vmem>>, %arg9: memref<8x128xf32, #tpu.memory_space<vmem>>) attributes {dimension_semantics = [#tpu.dimension_semantics<parallel>], iteration_bounds = array<i64: 1>, scalar_prefetch = 0 : i64, scratch_operands = 0 : i64, tpu.core_type = #tpu.core_type<tc>, window_params = [{transform_indices = @transform_0, window_bounds = array<i64: 8, 8>}, {pipeline_mode = #tpu.pipeline_mode<synchronous>, transform_indices = @transform_1, window_bounds = array<i64: 8, 128>}, {pipeline_mode = #tpu.pipeline_mode<synchronous>, transform_indices = @transform_2, window_bounds = array<i64: 1, 128>}, {pipeline_mode = #tpu.pipeline_mode<synchronous>, transform_indices = @transform_3, window_bounds = array<i64: 2, 128, 128>}, {pipeline_mode = #tpu.pipeline_mode<synchronous>, transform_indices = @transform_4, window_bounds = array<i64: 2, 128, 128>}, {pipeline_mode = #tpu.pipeline_mode<synchronous>, transform_indices = @transform_5, window_bounds = array<i64: 2, 16, 128>}, {pipeline_mode = #tpu.pipeline_mode<synchronous>, transform_indices = @transform_6, window_bounds = array<i64: 128, 128>}, {pipeline_mode = #tpu.pipeline_mode<synchronous>, transform_indices = @transform_7, window_bounds = array<i64: 1, 128>}, {transform_indices = @transform_8, window_bounds = array<i64: 8, 128>}]} {
    %c0 = arith.constant 0 : index
    %c0_0 = arith.constant 0 : index
    %0 = vector.load %arg1[%c0, %c0_0] : memref<8x8xf32, #tpu.memory_space<vmem>>, vector<8x8xf32>
    %c0_1 = arith.constant 0 : index
    %c0_2 = arith.constant 0 : index
    %1 = vector.load %arg2[%c0_1, %c0_2] : memref<8x128xf32, #tpu.memory_space<vmem>>, vector<8x128xf32>
    %cst = arith.constant dense<0.000000e+00> : vector<8x128xf32>
    %2 = tpu.matmul %0, %1, %cst {dimension_numbers = #tpu.dot_dimension_numbers<[1], [0], [0], [1], [0, 0, 1, 1], [], []>} : vector<8x8xf32>, vector<8x128xf32>, vector<8x128xf32> -> vector<8x128xf32>
    %c0_3 = arith.constant 0 : index
    %c0_4 = arith.constant 0 : index
    %3 = vector.load %arg3[%c0_3, %c0_4] : memref<1x128xf32, #tpu.memory_space<vmem>>, vector<1x128xf32>
    %4 = vector.broadcast %3 : vector<1x128xf32> to vector<8x128xf32>
    %5 = arith.addf %2, %4 : vector<8x128xf32>
    %c0_i32 = arith.constant 0 : i32
    %6 = arith.index_cast %c0_i32 : i32 to index
    %c0_5 = arith.constant 0 : index
    %c0_6 = arith.constant 0 : index
    %7 = vector.load %arg6[%6, %c0_5, %c0_6] : memref<2x16x128xf32, #tpu.memory_space<vmem>>, vector<1x16x128xf32>
    %8 = vector.shape_cast %7 : vector<1x16x128xf32> to vector<16x128xf32>
    %9 = vector.extract_strided_slice %8 {offsets = [0, 0], sizes = [1, 128], strides = [1, 1]} : vector<16x128xf32> to vector<1x128xf32>
    %10 = vector.extract_strided_slice %8 {offsets = [1, 0], sizes = [1, 128], strides = [1, 1]} : vector<16x128xf32> to vector<1x128xf32>
    %11 = vector.extract_strided_slice %8 {offsets = [2, 0], sizes = [1, 128], strides = [1, 1]} : vector<16x128xf32> to vector<1x128xf32>
    %12 = vector.extract_strided_slice %8 {offsets = [3, 0], sizes = [1, 128], strides = [1, 1]} : vector<16x128xf32> to vector<1x128xf32>
    %13 = vector.extract_strided_slice %8 {offsets = [4, 0], sizes = [1, 128], strides = [1, 1]} : vector<16x128xf32> to vector<1x128xf32>
    %14 = vector.extract_strided_slice %8 {offsets = [5, 0], sizes = [1, 128], strides = [1, 1]} : vector<16x128xf32> to vector<1x128xf32>
    %15 = vector.extract_strided_slice %8 {offsets = [6, 0], sizes = [1, 128], strides = [1, 1]} : vector<16x128xf32> to vector<1x128xf32>
    %16 = vector.extract_strided_slice %8 {offsets = [7, 0], sizes = [1, 128], strides = [1, 1]} : vector<16x128xf32> to vector<1x128xf32>
    %17 = vector.extract_strided_slice %8 {offsets = [8, 0], sizes = [1, 128], strides = [1, 1]} : vector<16x128xf32> to vector<1x128xf32>
    %18 = vector.extract_strided_slice %8 {offsets = [9, 0], sizes = [1, 128], strides = [1, 1]} : vector<16x128xf32> to vector<1x128xf32>
    %19 = vector.extract_strided_slice %8 {offsets = [10, 0], sizes = [1, 128], strides = [1, 1]} : vector<16x128xf32> to vector<1x128xf32>
    %20 = arith.index_cast %c0_i32 : i32 to index
    %c0_7 = arith.constant 0 : index
    %c0_8 = arith.constant 0 : index
    %21 = vector.load %arg4[%20, %c0_7, %c0_8] : memref<2x128x128xf32, #tpu.memory_space<vmem>>, vector<1x128x128xf32>
    %22 = vector.shape_cast %21 : vector<1x128x128xf32> to vector<128x128xf32>
    %cst_9 = arith.constant dense<0.000000e+00> : vector<8x128xf32>
    %23 = tpu.matmul %5, %22, %cst_9 {dimension_numbers = #tpu.dot_dimension_numbers<[1], [0], [0], [1], [0, 0, 1, 1], [], []>} : vector<8x128xf32>, vector<128x128xf32>, vector<8x128xf32> -> vector<8x128xf32>
    %24 = vector.broadcast %9 : vector<1x128xf32> to vector<8x128xf32>
    %25 = arith.addf %23, %24 : vector<8x128xf32>
    %26 = vector.broadcast %13 : vector<1x128xf32> to vector<8x128xf32>
    %27 = arith.mulf %26, %25 : vector<8x128xf32>
    %28 = math.tanh %27 : vector<8x128xf32>
    %29 = vector.broadcast %12 : vector<1x128xf32> to vector<8x128xf32>
    %30 = arith.mulf %29, %28 : vector<8x128xf32>
    %31 = vector.broadcast %11 : vector<1x128xf32> to vector<8x128xf32>
    %32 = arith.addf %31, %30 : vector<8x128xf32>
    %33 = arith.mulf %32, %25 : vector<8x128xf32>
    %34 = arith.index_cast %c0_i32 : i32 to index
    %c0_10 = arith.constant 0 : index
    %c0_11 = arith.constant 0 : index
    %35 = vector.load %arg5[%34, %c0_10, %c0_11] : memref<2x128x128xf32, #tpu.memory_space<vmem>>, vector<1x128x128xf32>
    %36 = vector.shape_cast %35 : vector<1x128x128xf32> to vector<128x128xf32>
    %cst_12 = arith.constant dense<0.000000e+00> : vector<8x128xf32>
    %37 = tpu.matmul %33, %36, %cst_12 {dimension_numbers = #tpu.dot_dimension_numbers<[1], [0], [0], [1], [0, 0, 1, 1], [], []>} : vector<8x128xf32>, vector<128x128xf32>, vector<8x128xf32> -> vector<8x128xf32>
    %38 = vector.broadcast %10 : vector<1x128xf32> to vector<8x128xf32>
    %39 = arith.addf %37, %38 : vector<8x128xf32>
    %40 = vector.broadcast %16 : vector<1x128xf32> to vector<8x128xf32>
    %41 = arith.mulf %40, %39 : vector<8x128xf32>
    %42 = math.tanh %41 : vector<8x128xf32>
    %43 = vector.broadcast %15 : vector<1x128xf32> to vector<8x128xf32>
    %44 = arith.mulf %43, %42 : vector<8x128xf32>
    %45 = vector.broadcast %14 : vector<1x128xf32> to vector<8x128xf32>
    %46 = arith.addf %45, %44 : vector<8x128xf32>
    %47 = arith.mulf %46, %39 : vector<8x128xf32>
    %48 = arith.addf %47, %5 : vector<8x128xf32>
    %49 = vector.broadcast %19 : vector<1x128xf32> to vector<8x128xf32>
    %50 = arith.mulf %49, %48 : vector<8x128xf32>
    %51 = math.tanh %50 : vector<8x128xf32>
    %52 = vector.broadcast %18 : vector<1x128xf32> to vector<8x128xf32>
    %53 = arith.mulf %52, %51 : vector<8x128xf32>
    %54 = vector.broadcast %17 : vector<1x128xf32> to vector<8x128xf32>
    %55 = arith.addf %54, %53 : vector<8x128xf32>
    %56 = arith.mulf %55, %48 : vector<8x128xf32>
    %c1_i32 = arith.constant 1 : i32
    %57 = arith.index_cast %c1_i32 : i32 to index
    %c0_13 = arith.constant 0 : index
    %c0_14 = arith.constant 0 : index
    %58 = vector.load %arg6[%57, %c0_13, %c0_14] : memref<2x16x128xf32, #tpu.memory_space<vmem>>, vector<1x16x128xf32>
    %59 = vector.shape_cast %58 : vector<1x16x128xf32> to vector<16x128xf32>
    %60 = vector.extract_strided_slice %59 {offsets = [0, 0], sizes = [1, 128], strides = [1, 1]} : vector<16x128xf32> to vector<1x128xf32>
    %61 = vector.extract_strided_slice %59 {offsets = [1, 0], sizes = [1, 128], strides = [1, 1]} : vector<16x128xf32> to vector<1x128xf32>
    %62 = vector.extract_strided_slice %59 {offsets = [2, 0], sizes = [1, 128], strides = [1, 1]} : vector<16x128xf32> to vector<1x128xf32>
    %63 = vector.extract_strided_slice %59 {offsets = [3, 0], sizes = [1, 128], strides = [1, 1]} : vector<16x128xf32> to vector<1x128xf32>
    %64 = vector.extract_strided_slice %59 {offsets = [4, 0], sizes = [1, 128], strides = [1, 1]} : vector<16x128xf32> to vector<1x128xf32>
    %65 = vector.extract_strided_slice %59 {offsets = [5, 0], sizes = [1, 128], strides = [1, 1]} : vector<16x128xf32> to vector<1x128xf32>
    %66 = vector.extract_strided_slice %59 {offsets = [6, 0], sizes = [1, 128], strides = [1, 1]} : vector<16x128xf32> to vector<1x128xf32>
    %67 = vector.extract_strided_slice %59 {offsets = [7, 0], sizes = [1, 128], strides = [1, 1]} : vector<16x128xf32> to vector<1x128xf32>
    %68 = vector.extract_strided_slice %59 {offsets = [8, 0], sizes = [1, 128], strides = [1, 1]} : vector<16x128xf32> to vector<1x128xf32>
    %69 = vector.extract_strided_slice %59 {offsets = [9, 0], sizes = [1, 128], strides = [1, 1]} : vector<16x128xf32> to vector<1x128xf32>
    %70 = vector.extract_strided_slice %59 {offsets = [10, 0], sizes = [1, 128], strides = [1, 1]} : vector<16x128xf32> to vector<1x128xf32>
    %71 = arith.index_cast %c1_i32 : i32 to index
    %c0_15 = arith.constant 0 : index
    %c0_16 = arith.constant 0 : index
    %72 = vector.load %arg4[%71, %c0_15, %c0_16] : memref<2x128x128xf32, #tpu.memory_space<vmem>>, vector<1x128x128xf32>
    %73 = vector.shape_cast %72 : vector<1x128x128xf32> to vector<128x128xf32>
    %cst_17 = arith.constant dense<0.000000e+00> : vector<8x128xf32>
    %74 = tpu.matmul %56, %73, %cst_17 {dimension_numbers = #tpu.dot_dimension_numbers<[1], [0], [0], [1], [0, 0, 1, 1], [], []>} : vector<8x128xf32>, vector<128x128xf32>, vector<8x128xf32> -> vector<8x128xf32>
    %75 = vector.broadcast %60 : vector<1x128xf32> to vector<8x128xf32>
    %76 = arith.addf %74, %75 : vector<8x128xf32>
    %77 = vector.broadcast %64 : vector<1x128xf32> to vector<8x128xf32>
    %78 = arith.mulf %77, %76 : vector<8x128xf32>
    %79 = math.tanh %78 : vector<8x128xf32>
    %80 = vector.broadcast %63 : vector<1x128xf32> to vector<8x128xf32>
    %81 = arith.mulf %80, %79 : vector<8x128xf32>
    %82 = vector.broadcast %62 : vector<1x128xf32> to vector<8x128xf32>
    %83 = arith.addf %82, %81 : vector<8x128xf32>
    %84 = arith.mulf %83, %76 : vector<8x128xf32>
    %85 = arith.index_cast %c1_i32 : i32 to index
    %c0_18 = arith.constant 0 : index
    %c0_19 = arith.constant 0 : index
    %86 = vector.load %arg5[%85, %c0_18, %c0_19] : memref<2x128x128xf32, #tpu.memory_space<vmem>>, vector<1x128x128xf32>
    %87 = vector.shape_cast %86 : vector<1x128x128xf32> to vector<128x128xf32>
    %cst_20 = arith.constant dense<0.000000e+00> : vector<8x128xf32>
    %88 = tpu.matmul %84, %87, %cst_20 {dimension_numbers = #tpu.dot_dimension_numbers<[1], [0], [0], [1], [0, 0, 1, 1], [], []>} : vector<8x128xf32>, vector<128x128xf32>, vector<8x128xf32> -> vector<8x128xf32>
    %89 = vector.broadcast %61 : vector<1x128xf32> to vector<8x128xf32>
    %90 = arith.addf %88, %89 : vector<8x128xf32>
    %91 = vector.broadcast %67 : vector<1x128xf32> to vector<8x128xf32>
    %92 = arith.mulf %91, %90 : vector<8x128xf32>
    %93 = math.tanh %92 : vector<8x128xf32>
    %94 = vector.broadcast %66 : vector<1x128xf32> to vector<8x128xf32>
    %95 = arith.mulf %94, %93 : vector<8x128xf32>
    %96 = vector.broadcast %65 : vector<1x128xf32> to vector<8x128xf32>
    %97 = arith.addf %96, %95 : vector<8x128xf32>
    %98 = arith.mulf %97, %90 : vector<8x128xf32>
    %99 = arith.addf %98, %56 : vector<8x128xf32>
    %100 = vector.broadcast %70 : vector<1x128xf32> to vector<8x128xf32>
    %101 = arith.mulf %100, %99 : vector<8x128xf32>
    %102 = math.tanh %101 : vector<8x128xf32>
    %103 = vector.broadcast %69 : vector<1x128xf32> to vector<8x128xf32>
    %104 = arith.mulf %103, %102 : vector<8x128xf32>
    %105 = vector.broadcast %68 : vector<1x128xf32> to vector<8x128xf32>
    %106 = arith.addf %105, %104 : vector<8x128xf32>
    %107 = arith.mulf %106, %99 : vector<8x128xf32>
    %c2_i32 = arith.constant 2 : i32
    %c0_21 = arith.constant 0 : index
    %c0_22 = arith.constant 0 : index
    %108 = vector.load %arg7[%c0_21, %c0_22] : memref<128x128xf32, #tpu.memory_space<vmem>>, vector<128x128xf32>
    %cst_23 = arith.constant dense<0.000000e+00> : vector<8x128xf32>
    %109 = tpu.matmul %107, %108, %cst_23 {dimension_numbers = #tpu.dot_dimension_numbers<[1], [0], [0], [1], [0, 0, 1, 1], [], []>} : vector<8x128xf32>, vector<128x128xf32>, vector<8x128xf32> -> vector<8x128xf32>
    %c0_24 = arith.constant 0 : index
    %c0_25 = arith.constant 0 : index
    %110 = vector.load %arg8[%c0_24, %c0_25] : memref<1x128xf32, #tpu.memory_space<vmem>>, vector<1x128xf32>
    %111 = vector.broadcast %110 : vector<1x128xf32> to vector<8x128xf32>
    %112 = arith.addf %109, %111 : vector<8x128xf32>
    %c0_26 = arith.constant 0 : index
    %c0_27 = arith.constant 0 : index
    %113 = vector.load %arg9[%c0_26, %c0_27] : memref<8x128xf32, #tpu.memory_space<vmem>>, vector<8x128xf32>
    tpu.vector_store %arg9[%c0_26, %c0_27], %112 {strides = array<i32>} : memref<8x128xf32, #tpu.memory_space<vmem>>, vector<8x128xf32>,
    return
  }
  func.func @transform_0(%arg0: i32) -> (i32, i32) {
    %c0_i32 = arith.constant 0 : i32
    %c0_i32_0 = arith.constant 0 : i32
    return %arg0, %c0_i32 : i32, i32
  }
  func.func @transform_1(%arg0: i32) -> (i32, i32) {
    %c0_i32 = arith.constant 0 : i32
    %c0_i32_0 = arith.constant 0 : i32
    %c0_i32_1 = arith.constant 0 : i32
    return %c0_i32, %c0_i32_0 : i32, i32
  }
  func.func @transform_2(%arg0: i32) -> (i32, i32) {
    %c0_i32 = arith.constant 0 : i32
    %c0_i32_0 = arith.constant 0 : i32
    %c0_i32_1 = arith.constant 0 : i32
    return %c0_i32, %c0_i32_0 : i32, i32
  }
  func.func @transform_3(%arg0: i32) -> (i32, i32, i32) {
    %c0_i32 = arith.constant 0 : i32
    %c0_i32_0 = arith.constant 0 : i32
    %c0_i32_1 = arith.constant 0 : i32
    %c0_i32_2 = arith.constant 0 : i32
    return %c0_i32, %c0_i32_0, %c0_i32_1 : i32, i32, i32
  }
  func.func @transform_4(%arg0: i32) -> (i32, i32, i32) {
    %c0_i32 = arith.constant 0 : i32
    %c0_i32_0 = arith.constant 0 : i32
    %c0_i32_1 = arith.constant 0 : i32
    %c0_i32_2 = arith.constant 0 : i32
    return %c0_i32, %c0_i32_0, %c0_i32_1 : i32, i32, i32
  }
  func.func @transform_5(%arg0: i32) -> (i32, i32, i32) {
    %c0_i32 = arith.constant 0 : i32
    %c0_i32_0 = arith.constant 0 : i32
    %c0_i32_1 = arith.constant 0 : i32
    %c0_i32_2 = arith.constant 0 : i32
    return %c0_i32, %c0_i32_0, %c0_i32_1 : i32, i32, i32
  }
  func.func @transform_6(%arg0: i32) -> (i32, i32) {
    %c0_i32 = arith.constant 0 : i32
    %c0_i32_0 = arith.constant 0 : i32
    %c0_i32_1 = arith.constant 0 : i32
    return %c0_i32, %c0_i32_0 : i32, i32
  }
  func.func @transform_7(%arg0: i32) -> (i32, i32) {
    %c0_i32 = arith.constant 0 : i32
    %c0_i32_0 = arith.constant 0 : i32
    %c0_i32_1 = arith.constant 0 : i32
    return %c0_i32, %c0_i32_0 : i32, i32
  }
  func.func @transform_8(%arg0: i32) -> (i32, i32) {
    %c0_i32 = arith.constant 0 : i32
    %c0_i32_0 = arith.constant 0 : i32
    return %arg0, %c0_i32 : i32, i32
  }
}

module attributes {stable_mosaic.version = 11 : i64} {
  func.func @resmlp2_kernel(%arg0: i32, %arg1: memref<8x8xf32, #tpu.memory_space<vmem>>, %arg2: memref<8x128xf32, #tpu.memory_space<vmem>>, %arg3: memref<1x128xf32, #tpu.memory_space<vmem>>, %arg4: memref<2x128x128xf32, #tpu.memory_space<vmem>>, %arg5: memref<2x128x128xf32, #tpu.memory_space<vmem>>, %arg6: memref<2x16x128xf32, #tpu.memory_space<vmem>>, %arg7: memref<128x128xf32, #tpu.memory_space<vmem>>, %arg8: memref<1x128xf32, #tpu.memory_space<vmem>>, %arg9: memref<8x128xf32, #tpu.memory_space<vmem>>) attributes {dimension_semantics = [#tpu.dimension_semantics<parallel>], iteration_bounds = array<i64: 1>, scalar_prefetch = 0 : i64, scratch_operands = 0 : i64, tpu.core_type = #tpu.core_type<tc>, window_params = [{transform_indices = @transform_0, window_bounds = array<i64: 8, 8>}, {pipeline_mode = #tpu.pipeline_mode<synchronous>, transform_indices = @transform_1, window_bounds = array<i64: 8, 128>}, {pipeline_mode = #tpu.pipeline_mode<synchronous>, transform_indices = @transform_2, window_bounds = array<i64: 1, 128>}, {pipeline_mode = #tpu.pipeline_mode<synchronous>, transform_indices = @transform_3, window_bounds = array<i64: 2, 128, 128>}, {pipeline_mode = #tpu.pipeline_mode<synchronous>, transform_indices = @transform_4, window_bounds = array<i64: 2, 128, 128>}, {pipeline_mode = #tpu.pipeline_mode<synchronous>, transform_indices = @transform_5, window_bounds = array<i64: 2, 16, 128>}, {pipeline_mode = #tpu.pipeline_mode<synchronous>, transform_indices = @transform_6, window_bounds = array<i64: 128, 128>}, {pipeline_mode = #tpu.pipeline_mode<synchronous>, transform_indices = @transform_7, window_bounds = array<i64: 1, 128>}, {transform_indices = @transform_8, window_bounds = array<i64: 8, 128>}]} {
    %c0 = arith.constant 0 : index
    %c0_0 = arith.constant 0 : index
    %0 = vector.load %arg1[%c0, %c0_0] : memref<8x8xf32, #tpu.memory_space<vmem>>, vector<8x8xf32>
    %c0_1 = arith.constant 0 : index
    %c0_2 = arith.constant 0 : index
    %1 = vector.load %arg2[%c0_1, %c0_2] : memref<8x128xf32, #tpu.memory_space<vmem>>, vector<8x128xf32>
    %cst = arith.constant dense<0.000000e+00> : vector<8x128xf32>
    %2 = tpu.matmul %0, %1, %cst {dimension_numbers = #tpu.dot_dimension_numbers<[1], [0], [0], [1], [0, 0, 1, 1], [], []>} : vector<8x8xf32>, vector<8x128xf32>, vector<8x128xf32> -> vector<8x128xf32>
    %c0_3 = arith.constant 0 : index
    %c0_4 = arith.constant 0 : index
    %3 = vector.load %arg3[%c0_3, %c0_4] : memref<1x128xf32, #tpu.memory_space<vmem>>, vector<1x128xf32>
    %4 = vector.broadcast %3 : vector<1x128xf32> to vector<8x128xf32>
    %5 = arith.addf %2, %4 : vector<8x128xf32>
    %c0_i32 = arith.constant 0 : i32
    %6 = arith.index_cast %c0_i32 : i32 to index
    %c0_5 = arith.constant 0 : index
    %c0_6 = arith.constant 0 : index
    %7 = vector.load %arg6[%6, %c0_5, %c0_6] : memref<2x16x128xf32, #tpu.memory_space<vmem>>, vector<1x16x128xf32>
    %8 = vector.shape_cast %7 : vector<1x16x128xf32> to vector<16x128xf32>
    %9 = vector.extract_strided_slice %8 {offsets = [0, 0], sizes = [1, 128], strides = [1, 1]} : vector<16x128xf32> to vector<1x128xf32>
    %10 = vector.extract_strided_slice %8 {offsets = [1, 0], sizes = [1, 128], strides = [1, 1]} : vector<16x128xf32> to vector<1x128xf32>
    %11 = vector.extract_strided_slice %8 {offsets = [2, 0], sizes = [1, 128], strides = [1, 1]} : vector<16x128xf32> to vector<1x128xf32>
    %12 = vector.extract_strided_slice %8 {offsets = [3, 0], sizes = [1, 128], strides = [1, 1]} : vector<16x128xf32> to vector<1x128xf32>
    %13 = vector.extract_strided_slice %8 {offsets = [4, 0], sizes = [1, 128], strides = [1, 1]} : vector<16x128xf32> to vector<1x128xf32>
    %14 = vector.extract_strided_slice %8 {offsets = [5, 0], sizes = [1, 128], strides = [1, 1]} : vector<16x128xf32> to vector<1x128xf32>
    %15 = vector.extract_strided_slice %8 {offsets = [6, 0], sizes = [1, 128], strides = [1, 1]} : vector<16x128xf32> to vector<1x128xf32>
    %16 = vector.extract_strided_slice %8 {offsets = [7, 0], sizes = [1, 128], strides = [1, 1]} : vector<16x128xf32> to vector<1x128xf32>
    %17 = vector.extract_strided_slice %8 {offsets = [8, 0], sizes = [1, 128], strides = [1, 1]} : vector<16x128xf32> to vector<1x128xf32>
    %18 = vector.extract_strided_slice %8 {offsets = [9, 0], sizes = [1, 128], strides = [1, 1]} : vector<16x128xf32> to vector<1x128xf32>
    %19 = vector.extract_strided_slice %8 {offsets = [10, 0], sizes = [1, 128], strides = [1, 1]} : vector<16x128xf32> to vector<1x128xf32>
    %20 = arith.index_cast %c0_i32 : i32 to index
    %c0_7 = arith.constant 0 : index
    %c0_8 = arith.constant 0 : index
    %21 = vector.load %arg4[%20, %c0_7, %c0_8] : memref<2x128x128xf32, #tpu.memory_space<vmem>>, vector<1x128x128xf32>
    %22 = vector.shape_cast %21 : vector<1x128x128xf32> to vector<128x128xf32>
    %cst_9 = arith.constant dense<0.000000e+00> : vector<8x128xf32>
    %23 = tpu.matmul %5, %22, %cst_9 {dimension_numbers = #tpu.dot_dimension_numbers<[1], [0], [0], [1], [0, 0, 1, 1], [], []>} : vector<8x128xf32>, vector<128x128xf32>, vector<8x128xf32> -> vector<8x128xf32>
    %24 = vector.broadcast %9 : vector<1x128xf32> to vector<8x128xf32>
    %25 = arith.addf %23, %24 : vector<8x128xf32>
    %26 = vector.broadcast %13 : vector<1x128xf32> to vector<8x128xf32>
    %27 = arith.mulf %26, %25 : vector<8x128xf32>
    %28 = math.tanh %27 : vector<8x128xf32>
    %29 = vector.broadcast %12 : vector<1x128xf32> to vector<8x128xf32>
    %30 = arith.mulf %29, %28 : vector<8x128xf32>
    %31 = vector.broadcast %11 : vector<1x128xf32> to vector<8x128xf32>
    %32 = arith.addf %31, %30 : vector<8x128xf32>
    %33 = arith.mulf %32, %25 : vector<8x128xf32>
    %34 = arith.index_cast %c0_i32 : i32 to index
    %c0_10 = arith.constant 0 : index
    %c0_11 = arith.constant 0 : index
    %35 = vector.load %arg5[%34, %c0_10, %c0_11] : memref<2x128x128xf32, #tpu.memory_space<vmem>>, vector<1x128x128xf32>
    %36 = vector.shape_cast %35 : vector<1x128x128xf32> to vector<128x128xf32>
    %cst_12 = arith.constant dense<0.000000e+00> : vector<8x128xf32>
    %37 = tpu.matmul %33, %36, %cst_12 {dimension_numbers = #tpu.dot_dimension_numbers<[1], [0], [0], [1], [0, 0, 1, 1], [], []>} : vector<8x128xf32>, vector<128x128xf32>, vector<8x128xf32> -> vector<8x128xf32>
    %38 = vector.broadcast %10 : vector<1x128xf32> to vector<8x128xf32>
    %39 = arith.addf %37, %38 : vector<8x128xf32>
    %40 = vector.broadcast %16 : vector<1x128xf32> to vector<8x128xf32>
    %41 = arith.mulf %40, %39 : vector<8x128xf32>
    %42 = math.tanh %41 : vector<8x128xf32>
    %43 = vector.broadcast %15 : vector<1x128xf32> to vector<8x128xf32>
    %44 = arith.mulf %43, %42 : vector<8x128xf32>
    %45 = vector.broadcast %14 : vector<1x128xf32> to vector<8x128xf32>
    %46 = arith.addf %45, %44 : vector<8x128xf32>
    %47 = arith.mulf %46, %39 : vector<8x128xf32>
    %48 = arith.addf %47, %5 : vector<8x128xf32>
    %49 = vector.broadcast %19 : vector<1x128xf32> to vector<8x128xf32>
    %50 = arith.mulf %49, %48 : vector<8x128xf32>
    %51 = math.tanh %50 : vector<8x128xf32>
    %52 = vector.broadcast %18 : vector<1x128xf32> to vector<8x128xf32>
    %53 = arith.mulf %52, %51 : vector<8x128xf32>
    %54 = vector.broadcast %17 : vector<1x128xf32> to vector<8x128xf32>
    %55 = arith.addf %54, %53 : vector<8x128xf32>
    %56 = arith.mulf %55, %48 : vector<8x128xf32>
    %c1_i32 = arith.constant 1 : i32
    %57 = arith.index_cast %c1_i32 : i32 to index
    %c0_13 = arith.constant 0 : index
    %c0_14 = arith.constant 0 : index
    %58 = vector.load %arg6[%57, %c0_13, %c0_14] : memref<2x16x128xf32, #tpu.memory_space<vmem>>, vector<1x16x128xf32>
    %59 = vector.shape_cast %58 : vector<1x16x128xf32> to vector<16x128xf32>
    %60 = vector.extract_strided_slice %59 {offsets = [0, 0], sizes = [1, 128], strides = [1, 1]} : vector<16x128xf32> to vector<1x128xf32>
    %61 = vector.extract_strided_slice %59 {offsets = [1, 0], sizes = [1, 128], strides = [1, 1]} : vector<16x128xf32> to vector<1x128xf32>
    %62 = vector.extract_strided_slice %59 {offsets = [2, 0], sizes = [1, 128], strides = [1, 1]} : vector<16x128xf32> to vector<1x128xf32>
    %63 = vector.extract_strided_slice %59 {offsets = [3, 0], sizes = [1, 128], strides = [1, 1]} : vector<16x128xf32> to vector<1x128xf32>
    %64 = vector.extract_strided_slice %59 {offsets = [4, 0], sizes = [1, 128], strides = [1, 1]} : vector<16x128xf32> to vector<1x128xf32>
    %65 = vector.extract_strided_slice %59 {offsets = [5, 0], sizes = [1, 128], strides = [1, 1]} : vector<16x128xf32> to vector<1x128xf32>
    %66 = vector.extract_strided_slice %59 {offsets = [6, 0], sizes = [1, 128], strides = [1, 1]} : vector<16x128xf32> to vector<1x128xf32>
    %67 = vector.extract_strided_slice %59 {offsets = [7, 0], sizes = [1, 128], strides = [1, 1]} : vector<16x128xf32> to vector<1x128xf32>
    %68 = vector.extract_strided_slice %59 {offsets = [8, 0], sizes = [1, 128], strides = [1, 1]} : vector<16x128xf32> to vector<1x128xf32>
    %69 = vector.extract_strided_slice %59 {offsets = [9, 0], sizes = [1, 128], strides = [1, 1]} : vector<16x128xf32> to vector<1x128xf32>
    %70 = vector.extract_strided_slice %59 {offsets = [10, 0], sizes = [1, 128], strides = [1, 1]} : vector<16x128xf32> to vector<1x128xf32>
    %71 = arith.index_cast %c1_i32 : i32 to index
    %c0_15 = arith.constant 0 : index
    %c0_16 = arith.constant 0 : index
    %72 = vector.load %arg4[%71, %c0_15, %c0_16] : memref<2x128x128xf32, #tpu.memory_space<vmem>>, vector<1x128x128xf32>
    %73 = vector.shape_cast %72 : vector<1x128x128xf32> to vector<128x128xf32>
    %cst_17 = arith.constant dense<0.000000e+00> : vector<8x128xf32>
    %74 = tpu.matmul %56, %73, %cst_17 {dimension_numbers = #tpu.dot_dimension_numbers<[1], [0], [0], [1], [0, 0, 1, 1], [], []>} : vector<8x128xf32>, vector<128x128xf32>, vector<8x128xf32> -> vector<8x128xf32>
    %75 = vector.broadcast %60 : vector<1x128xf32> to vector<8x128xf32>
    %76 = arith.addf %74, %75 : vector<8x128xf32>
    %77 = vector.broadcast %64 : vector<1x128xf32> to vector<8x128xf32>
    %78 = arith.mulf %77, %76 : vector<8x128xf32>
    %79 = math.tanh %78 : vector<8x128xf32>
    %80 = vector.broadcast %63 : vector<1x128xf32> to vector<8x128xf32>
    %81 = arith.mulf %80, %79 : vector<8x128xf32>
    %82 = vector.broadcast %62 : vector<1x128xf32> to vector<8x128xf32>
    %83 = arith.addf %82, %81 : vector<8x128xf32>
    %84 = arith.mulf %83, %76 : vector<8x128xf32>
    %85 = arith.index_cast %c1_i32 : i32 to index
    %c0_18 = arith.constant 0 : index
    %c0_19 = arith.constant 0 : index
    %86 = vector.load %arg5[%85, %c0_18, %c0_19] : memref<2x128x128xf32, #tpu.memory_space<vmem>>, vector<1x128x128xf32>
    %87 = vector.shape_cast %86 : vector<1x128x128xf32> to vector<128x128xf32>
    %cst_20 = arith.constant dense<0.000000e+00> : vector<8x128xf32>
    %88 = tpu.matmul %84, %87, %cst_20 {dimension_numbers = #tpu.dot_dimension_numbers<[1], [0], [0], [1], [0, 0, 1, 1], [], []>} : vector<8x128xf32>, vector<128x128xf32>, vector<8x128xf32> -> vector<8x128xf32>
    %89 = vector.broadcast %61 : vector<1x128xf32> to vector<8x128xf32>
    %90 = arith.addf %88, %89 : vector<8x128xf32>
    %91 = vector.broadcast %67 : vector<1x128xf32> to vector<8x128xf32>
    %92 = arith.mulf %91, %90 : vector<8x128xf32>
    %93 = math.tanh %92 : vector<8x128xf32>
    %94 = vector.broadcast %66 : vector<1x128xf32> to vector<8x128xf32>
    %95 = arith.mulf %94, %93 : vector<8x128xf32>
    %96 = vector.broadcast %65 : vector<1x128xf32> to vector<8x128xf32>
    %97 = arith.addf %96, %95 : vector<8x128xf32>
    %98 = arith.mulf %97, %90 : vector<8x128xf32>
    %99 = arith.addf %98, %56 : vector<8x128xf32>
    %100 = vector.broadcast %70 : vector<1x128xf32> to vector<8x128xf32>
    %101 = arith.mulf %100, %99 : vector<8x128xf32>
    %102 = math.tanh %101 : vector<8x128xf32>
    %103 = vector.broadcast %69 : vector<1x128xf32> to vector<8x128xf32>
    %104 = arith.mulf %103, %102 : vector<8x128xf32>
    %105 = vector.broadcast %68 : vector<1x128xf32> to vector<8x128xf32>
    %106 = arith.addf %105, %104 : vector<8x128xf32>
    %107 = arith.mulf %106, %99 : vector<8x128xf32>
    %c2_i32 = arith.constant 2 : i32
    %c0_21 = arith.constant 0 : index
    %c0_22 = arith.constant 0 : index
    %108 = vector.load %arg7[%c0_21, %c0_22] : memref<128x128xf32, #tpu.memory_space<vmem>>, vector<128x128xf32>
    %cst_23 = arith.constant dense<0.000000e+00> : vector<8x128xf32>
    %109 = tpu.matmul %107, %108, %cst_23 {dimension_numbers = #tpu.dot_dimension_numbers<[1], [0], [0], [1], [0, 0, 1, 1], [], []>} : vector<8x128xf32>, vector<128x128xf32>, vector<8x128xf32> -> vector<8x128xf32>
    %c0_24 = arith.constant 0 : index
    %c0_25 = arith.constant 0 : index
    %110 = vector.load %arg8[%c0_24, %c0_25] : memref<1x128xf32, #tpu.memory_space<vmem>>, vector<1x128xf32>
    %111 = vector.broadcast %110 : vector<1x128xf32> to vector<8x128xf32>
    %112 = arith.addf %109, %111 : vector<8x128xf32>
    %c0_26 = arith.constant 0 : index
    %c0_27 = arith.constant 0 : index
    %113 = vector.load %arg9[%c0_26, %c0_27] : memref<8x128xf32, #tpu.memory_space<vmem>>, vector<8x128xf32>
    tpu.vector_store %arg9[%c0_26, %c0_27], %112 {strides = array<i32>} : memref<8x128xf32, #tpu.memory_space<vmem>>, vector<8x128xf32>,
    return
  }
  func.func @transform_0(%arg0: i32) -> (i32, i32) {
    %c0_i32 = arith.constant 0 : i32
    %c0_i32_0 = arith.constant 0 : i32
    return %arg0, %c0_i32 : i32, i32
  }
  func.func @transform_1(%arg0: i32) -> (i32, i32) {
    %c0_i32 = arith.constant 0 : i32
    %c0_i32_0 = arith.constant 0 : i32
    %c0_i32_1 = arith.constant 0 : i32
    return %c0_i32, %c0_i32_0 : i32, i32
  }
  func.func @transform_2(%arg0: i32) -> (i32, i32) {
    %c0_i32 = arith.constant 0 : i32
    %c0_i32_0 = arith.constant 0 : i32
    %c0_i32_1 = arith.constant 0 : i32
    return %c0_i32, %c0_i32_0 : i32, i32
  }
  func.func @transform_3(%arg0: i32) -> (i32, i32, i32) {
    %c0_i32 = arith.constant 0 : i32
    %c0_i32_0 = arith.constant 0 : i32
    %c0_i32_1 = arith.constant 0 : i32
    %c0_i32_2 = arith.constant 0 : i32
    return %c0_i32, %c0_i32_0, %c0_i32_1 : i32, i32, i32
  }
  func.func @transform_4(%arg0: i32) -> (i32, i32, i32) {
    %c0_i32 = arith.constant 0 : i32
    %c0_i32_0 = arith.constant 0 : i32
    %c0_i32_1 = arith.constant 0 : i32
    %c0_i32_2 = arith.constant 0 : i32
    return %c0_i32, %c0_i32_0, %c0_i32_1 : i32, i32, i32
  }
  func.func @transform_5(%arg0: i32) -> (i32, i32, i32) {
    %c0_i32 = arith.constant 0 : i32
    %c0_i32_0 = arith.constant 0 : i32
    %c0_i32_1 = arith.constant 0 : i32
    %c0_i32_2 = arith.constant 0 : i32
    return %c0_i32, %c0_i32_0, %c0_i32_1 : i32, i32, i32
  }
  func.func @transform_6(%arg0: i32) -> (i32, i32) {
    %c0_i32 = arith.constant 0 : i32
    %c0_i32_0 = arith.constant 0 : i32
    %c0_i32_1 = arith.constant 0 : i32
    return %c0_i32, %c0_i32_0 : i32, i32
  }
  func.func @transform_7(%arg0: i32) -> (i32, i32) {
    %c0_i32 = arith.constant 0 : i32
    %c0_i32_0 = arith.constant 0 : i32
    %c0_i32_1 = arith.constant 0 : i32
    return %c0_i32, %c0_i32_0 : i32, i32
  }
  func.func @transform_8(%arg0: i32) -> (i32, i32) {
    %c0_i32 = arith.constant 0 : i32
    %c0_i32_0 = arith.constant 0 : i32
    return %arg0, %c0_i32 : i32, i32
  }
}

</mosaic_0001>

<llo_original>
// kernel: tpu_custom_call.1
$region0: #{tpu_custom_call.1}
  #allocation0 [shape = 'u32[]', space=smem, size = 0x4, offset = 0x4, fixed_abs, tag = 'smem constant byte address 0x4 - core index']
  #allocation1 [shape = 'u32[72,128]{1,0:T(1,128)}', space=vmem, size = 0x9000, scoped, tag = 'internal scratch']
  %s0 = inlined_call_operand.hbm [shape: f32[8,8], index: 0, kind: input, shape index: {}]
  %s1 = inlined_call_operand.hbm [shape: f32[8,128], index: 1, kind: input, shape index: {}]
  %s2 = inlined_call_operand.vmem [shape: f32[1,128], index: 2, kind: input, shape index: {}]
  %s3 = inlined_call_operand.hbm [shape: f32[2,128,128], index: 3, kind: input, shape index: {}]
  %s4 = inlined_call_operand.hbm [shape: f32[2,128,128], index: 4, kind: input, shape index: {}]
  %s5 = inlined_call_operand.hbm [shape: f32[2,16,128], index: 5, kind: input, shape index: {}]
  %s6 = inlined_call_operand.hbm [shape: f32[128,128], index: 6, kind: input, shape index: {}]
  %s7 = inlined_call_operand.vmem [shape: f32[1,128], index: 7, kind: input, shape index: {}]
  %s8 = inlined_call_operand.hbm [shape: f32[8,128], index: 8, kind: output, shape index: {}]
  %s9 = sld [smem:[#allocation0]]
  $region66: #{tpu_custom_call.1} parent=0
    _
  %s11 = ssub.s32 1, %s9
  %s12 = scalar_select 0, %s11, %s9
  $region1: #{tpu_custom_call.1} parent=0
    #allocation2 [shape = 'u8[4096]{0}', space=vmem, size = 0x1000, scoped, tag = 'input window, operand 0, single buffered']
    #allocation3 [shape = 's32[1]{0}', space=sflag, size = 0x4, scoped, tag = 'scoped memory for tpu_custom_call.1']
    #allocation4 [shape = 's32[1]{0}', space=sflag, size = 0x4, scoped, tag = 'scoped memory for tpu_custom_call.1']
    #allocation5 [shape = 'u8[4096]{0}', space=vmem, size = 0x1000, scoped, tag = 'input window, operand 1, single buffered']
    #allocation6 [shape = 's32[1]{0}', space=sflag, size = 0x4, scoped, tag = 'scoped memory for tpu_custom_call.1']
    #allocation7 [shape = 'u8[131072]{0}', space=vmem, size = 0x20000, scoped, tag = 'input window, operand 3, single buffered']
    #allocation8 [shape = 'u8[131072]{0}', space=vmem, size = 0x20000, scoped, tag = 'input window, operand 4, single buffered']
    #allocation9 [shape = 's32[1]{0}', space=sflag, size = 0x4, scoped, tag = 'scoped memory for tpu_custom_call.1']
    #allocation10 [shape = 'u8[16384]{0}', space=vmem, size = 0x4000, scoped, tag = 'input window, operand 5, single buffered']
    #allocation11 [shape = 'u8[65536]{0}', space=vmem, size = 0x10000, scoped, tag = 'input window, operand 6, single buffered']
    #allocation12 [shape = 's32[1]{0}', space=sflag, size = 0x4, scoped, tag = 'scoped memory for tpu_custom_call.1']
    #allocation13 [shape = 'u8[4096]{0}', space=vmem, size = 0x1000, scoped, tag = 'output window, operand 0, single buffered']
    %13 = vsyncpa [#allocation3], 0
    %14 = vsyncpa [#allocation6], 0
    %15 = vsyncpa [#allocation9], 0
    %16 = vsyncpa [#allocation12], 0
    %17 = vsyncpa [#allocation4], 0
    // Predicated region
    $region2: #{tpu_custom_call.1} parent=1 // pred_check
      _
    $region3: #{tpu_custom_call.1} parent=1 // pred_check_branch
      %19 = sbr.rel (0) target = $region5
    $region4: #{tpu_custom_call.1} parent=1 // pred_region
      %21 = vsyncadd [#allocation3], 0
      %s23 = sshll.u32 %s0, 4
      %s24 = int_to_ptr.hbm [resolvable:$true] %s23
      %s25 = sshll.u32 [#allocation2], 4
      %s26 = int_to_ptr.vmem [resolvable:$true] %s25
      %28 = dma.hbm_to_vmem [thread:$0]  %s24, 128, %s26, [#allocation3]
    $region5: #{tpu_custom_call.1} parent=1 // pred_fallthru
      _
    // Predicated region
    $region6: #{tpu_custom_call.1} parent=1 // pred_check
      _
    $region7: #{tpu_custom_call.1} parent=1 // pred_check_branch
      %30 = sbr.rel (0) target = $region9
    $region8: #{tpu_custom_call.1} parent=1 // pred_region
      %32 = vsyncadd [#allocation6], 0
      %s34 = sshll.u32 %s1, 4
      %s35 = int_to_ptr.hbm [resolvable:$true] %s34
      %s36 = sshll.u32 [#allocation5], 4
      %s37 = int_to_ptr.vmem [resolvable:$true] %s36
      %39 = dma.hbm_to_vmem [thread:$0]  %s35, 128, %s37, [#allocation6]
    $region9: #{tpu_custom_call.1} parent=1 // pred_fallthru
      _
    // Predicated region
    $region10: #{tpu_custom_call.1} parent=1 // pred_check
      _
    $region11: #{tpu_custom_call.1} parent=1 // pred_check_branch
      %41 = sbr.rel (0) target = $region13
    $region12: #{tpu_custom_call.1} parent=1 // pred_region
      _
    $region13: #{tpu_custom_call.1} parent=1 // pred_fallthru
      _
    // Predicated region
    $region14: #{tpu_custom_call.1} parent=1 // pred_check
      _
    $region15: #{tpu_custom_call.1} parent=1 // pred_check_branch
      %43 = sbr.rel (0) target = $region17
    $region16: #{tpu_custom_call.1} parent=1 // pred_region
      %45 = vsyncadd [#allocation6], 0
      %s46 = sshll.u32 %s3, 4
      %s47 = int_to_ptr.hbm [resolvable:$true] %s46
      %s48 = sshll.u32 [#allocation7], 4
      %s49 = int_to_ptr.vmem [resolvable:$true] %s48
      %54 = dma.hbm_to_vmem [thread:$0]  %s47, 4096, %s49, [#allocation6], 128, 128, 8
    $region17: #{tpu_custom_call.1} parent=1 // pred_fallthru
      _
    // Predicated region
    $region18: #{tpu_custom_call.1} parent=1 // pred_check
      _
    $region19: #{tpu_custom_call.1} parent=1 // pred_check_branch
      %56 = sbr.rel (0) target = $region21
    $region20: #{tpu_custom_call.1} parent=1 // pred_region
      %58 = vsyncadd [#allocation9], 0
      %s59 = sshll.u32 %s4, 4
      %s60 = int_to_ptr.hbm [resolvable:$true] %s59
      %s61 = sshll.u32 [#allocation8], 4
      %s62 = int_to_ptr.vmem [resolvable:$true] %s61
      %67 = dma.hbm_to_vmem [thread:$0]  %s60, 4096, %s62, [#allocation9], 128, 128, 8
    $region21: #{tpu_custom_call.1} parent=1 // pred_fallthru
      _
    // Predicated region
    $region22: #{tpu_custom_call.1} parent=1 // pred_check
      _
    $region23: #{tpu_custom_call.1} parent=1 // pred_check_branch
      %69 = sbr.rel (0) target = $region25
    $region24: #{tpu_custom_call.1} parent=1 // pred_region
      %71 = vsyncadd [#allocation9], 0
      %s72 = sshll.u32 %s5, 4
      %s73 = int_to_ptr.hbm [resolvable:$true] %s72
      %s74 = sshll.u32 [#allocation10], 4
      %s75 = int_to_ptr.vmem [resolvable:$true] %s74
      %80 = dma.hbm_to_vmem [thread:$0]  %s73, 512, %s75, [#allocation9], 128, 128, 8
    $region25: #{tpu_custom_call.1} parent=1 // pred_fallthru
      _
    // Predicated region
    $region26: #{tpu_custom_call.1} parent=1 // pred_check
      _
    $region27: #{tpu_custom_call.1} parent=1 // pred_check_branch
      %82 = sbr.rel (0) target = $region29
    $region28: #{tpu_custom_call.1} parent=1 // pred_region
      %84 = vsyncadd [#allocation12], 0
      %s85 = sshll.u32 %s6, 4
      %s86 = int_to_ptr.hbm [resolvable:$true] %s85
      %s87 = sshll.u32 [#allocation11], 4
      %s88 = int_to_ptr.vmem [resolvable:$true] %s87
      %93 = dma.hbm_to_vmem [thread:$0]  %s86, 2048, %s88, [#allocation12], 128, 128, 8
    $region29: #{tpu_custom_call.1} parent=1 // pred_fallthru
      _
    // Predicated region
    $region30: #{tpu_custom_call.1} parent=1 // pred_check
      _
    $region31: #{tpu_custom_call.1} parent=1 // pred_check_branch
      %95 = sbr.rel (0) target = $region33
    $region32: #{tpu_custom_call.1} parent=1 // pred_region
      _
    $region33: #{tpu_custom_call.1} parent=1 // pred_fallthru
      _
    // Predicated region
    $region34: #{tpu_custom_call.1} parent=1 // pred_check
      _
    $region35: #{tpu_custom_call.1} parent=1 // pred_check_branch
      %97 = sbr.rel (0) target = $region37
    $region36: #{tpu_custom_call.1} parent=1 // pred_region
      %99 = dma.done [#allocation3], 128
    $region37: #{tpu_custom_call.1} parent=1 // pred_fallthru
      _
    // Predicated region
    $region38: #{tpu_custom_call.1} parent=1 // pred_check
      _
    $region39: #{tpu_custom_call.1} parent=1 // pred_check_branch
      %101 = sbr.rel (0) target = $region41
    $region40: #{tpu_custom_call.1} parent=1 // pred_region
      %103 = dma.done [#allocation6], 128
    $region41: #{tpu_custom_call.1} parent=1 // pred_fallthru
      _
    // Predicated region
    $region42: #{tpu_custom_call.1} parent=1 // pred_check
      _
    $region43: #{tpu_custom_call.1} parent=1 // pred_check_branch
      %105 = sbr.rel (0) target = $region45
    $region44: #{tpu_custom_call.1} parent=1 // pred_region
      %107 = dma.done [#allocation6], 4096
    $region45: #{tpu_custom_call.1} parent=1 // pred_fallthru
      _
    // Predicated region
    $region46: #{tpu_custom_call.1} parent=1 // pred_check
      _
    $region47: #{tpu_custom_call.1} parent=1 // pred_check_branch
      %109 = sbr.rel (0) target = $region49
    $region48: #{tpu_custom_call.1} parent=1 // pred_region
      %111 = dma.done [#allocation9], 4096
    $region49: #{tpu_custom_call.1} parent=1 // pred_fallthru
      _
    // Predicated region
    $region50: #{tpu_custom_call.1} parent=1 // pred_check
      _
    $region51: #{tpu_custom_call.1} parent=1 // pred_check_branch
      %113 = sbr.rel (0) target = $region53
    $region52: #{tpu_custom_call.1} parent=1 // pred_region
      %115 = dma.done [#allocation9], 512
    $region53: #{tpu_custom_call.1} parent=1 // pred_fallthru
      _
    // Predicated region
    $region54: #{tpu_custom_call.1} parent=1 // pred_check
      _
    $region55: #{tpu_custom_call.1} parent=1 // pred_check_branch
      %117 = sbr.rel (0) target = $region57
    $region56: #{tpu_custom_call.1} parent=1 // pred_region
      %119 = dma.done [#allocation12], 2048
    $region57: #{tpu_custom_call.1} parent=1 // pred_fallthru
      _
    %v120 = vld [vmem:[#allocation2] sm:$0xff]
    %v121 = vld [vmem:[#allocation5] sm:$0xff]
    %v122 = vld [vmem:[%s2] sm:$0x1]
    %v124 = vperm.slane %v122, 0
    %vm126 = vcmask 64512
    %v128 = vsel %vm126, %v120, 0
    %130 = vmatpush.msra.mxu0 0.0
    %131 = vmatpush.msra.mxu0 0.0
    %132 = vmatpush.msra.mxu0 0.0
    %133 = vmatpush.msra.mxu0 0.0
    %134 = vmatpush.msra.mxu0 0.0
    %135 = vmatpush.msra.mxu0 0.0
    %136 = vmatpush.msra.mxu0 0.0
    %137 = vmatpush.msra.mxu0 0.0
    %138 = vmatpush.msra.mxu0 0.0
    %139 = vmatpush.msra.mxu0 0.0
    %140 = vmatpush.msra.mxu0 0.0
    %141 = vmatpush.msra.mxu0 0.0
    %142 = vmatpush.msra.mxu0 0.0
    %143 = vmatpush.msra.mxu0 0.0
    %144 = vmatpush.msra.mxu0 0.0
    %145 = vmatpush.msra.mxu0 %v121
    %146 = vmatmul.f32.gmra.mxu0 %v128
    %v147 = vpop.f32.mrf.mxu0
    %v148 = vadd.f32 %v124, %v147
    %149 = vdwg.mxu0
    %v150 = vld [vmem:[#allocation10] sm:$0xff]
    %v151 = vld [vmem:[#allocation10 + $0x8] sm:$0xff]
    %v152 = vld [vmem:[#allocation7] sm:$0xff]
    %v153 = vld [vmem:[#allocation7 + $0x8] sm:$0xff]
    %v154 = vld [vmem:[#allocation7 + $0x10] sm:$0xff]
    %v155 = vld [vmem:[#allocation7 + $0x18] sm:$0xff]
    %v156 = vld [vmem:[#allocation7 + $0x20] sm:$0xff]
    %v157 = vld [vmem:[#allocation7 + $0x28] sm:$0xff]
    %v158 = vld [vmem:[#allocation7 + $0x30] sm:$0xff]
    %v159 = vld [vmem:[#allocation7 + $0x38] sm:$0xff]
    %v160 = vld [vmem:[#allocation7 + $0x40] sm:$0xff]
    %v161 = vld [vmem:[#allocation7 + $0x48] sm:$0xff]
    %v162 = vld [vmem:[#allocation7 + $0x50] sm:$0xff]
    %v163 = vld [vmem:[#allocation7 + $0x58] sm:$0xff]
    %v164 = vld [vmem:[#allocation7 + $0x60] sm:$0xff]
    %v165 = vld [vmem:[#allocation7 + $0x68] sm:$0xff]
    %v166 = vld [vmem:[#allocation7 + $0x70] sm:$0xff]
    %v167 = vld [vmem:[#allocation7 + $0x78] sm:$0xff]
    %v168 = vperm.slane %v150, 0
    %169 = vmatpush.msra.mxu0 %v167
    %170 = vmatpush.msra.mxu0 %v166
    %171 = vmatpush.msra.mxu0 %v165
    %172 = vmatpush.msra.mxu0 %v164
    %173 = vmatpush.msra.mxu0 %v163
    %174 = vmatpush.msra.mxu0 %v162
    %175 = vmatpush.msra.mxu0 %v161
    %176 = vmatpush.msra.mxu0 %v160
    %177 = vmatpush.msra.mxu0 %v159
    %178 = vmatpush.msra.mxu0 %v158
    %179 = vmatpush.msra.mxu0 %v157
    %180 = vmatpush.msra.mxu0 %v156
    %181 = vmatpush.msra.mxu0 %v155
    %182 = vmatpush.msra.mxu0 %v154
    %183 = vmatpush.msra.mxu0 %v153
    %184 = vmatpush.msra.mxu0 %v152
    %185 = vmatmul.f32.gmra.mxu0 %v148
    %v186 = vpop.f32.mrf.mxu0
    %v187 = vadd.f32 %v168, %v186
    %188 = vdwg.mxu0
    %v189 = vperm.slane %v150, 4
    %v190 = vmul.f32 %v189, %v187
    %v191 = vtanh.pop %v190
    %v192 = vperm.slane %v150, 3
    %v193 = vmul.f32 %v192, %v191
    %v194 = vperm.slane %v150, 2
    %v195 = vadd.f32 %v194, %v193
    %v196 = vmul.f32 %v195, %v187
    %v197 = vld [vmem:[#allocation8] sm:$0xff]
    %v198 = vld [vmem:[#allocation8 + $0x8] sm:$0xff]
    %v199 = vld [vmem:[#allocation8 + $0x10] sm:$0xff]
    %v200 = vld [vmem:[#allocation8 + $0x18] sm:$0xff]
    %v201 = vld [vmem:[#allocation8 + $0x20] sm:$0xff]
    %v202 = vld [vmem:[#allocation8 + $0x28] sm:$0xff]
    %v203 = vld [vmem:[#allocation8 + $0x30] sm:$0xff]
    %v204 = vld [vmem:[#allocation8 + $0x38] sm:$0xff]
    %v205 = vld [vmem:[#allocation8 + $0x40] sm:$0xff]
    %v206 = vld [vmem:[#allocation8 + $0x48] sm:$0xff]
    %v207 = vld [vmem:[#allocation8 + $0x50] sm:$0xff]
    %v208 = vld [vmem:[#allocation8 + $0x58] sm:$0xff]
    %v209 = vld [vmem:[#allocation8 + $0x60] sm:$0xff]
    %v210 = vld [vmem:[#allocation8 + $0x68] sm:$0xff]
    %v211 = vld [vmem:[#allocation8 + $0x70] sm:$0xff]
    %v212 = vld [vmem:[#allocation8 + $0x78] sm:$0xff]
    %v213 = vperm.slane %v150, 1
    %214 = vmatpush.msra.mxu0 %v212
    %215 = vmatpush.msra.mxu0 %v211
    %216 = vmatpush.msra.mxu0 %v210
    %217 = vmatpush.msra.mxu0 %v209
    %218 = vmatpush.msra.mxu0 %v208
    %219 = vmatpush.msra.mxu0 %v207
    %220 = vmatpush.msra.mxu0 %v206
    %221 = vmatpush.msra.mxu0 %v205
    %222 = vmatpush.msra.mxu0 %v204
    %223 = vmatpush.msra.mxu0 %v203
    %224 = vmatpush.msra.mxu0 %v202
    %225 = vmatpush.msra.mxu0 %v201
    %226 = vmatpush.msra.mxu0 %v200
    %227 = vmatpush.msra.mxu0 %v199
    %228 = vmatpush.msra.mxu0 %v198
    %229 = vmatpush.msra.mxu0 %v197
    %230 = vmatmul.f32.gmra.mxu0 %v196
    %v231 = vpop.f32.mrf.mxu0
    %v232 = vadd.f32 %v213, %v231
    %233 = vdwg.mxu0
    %v234 = vperm.slane %v150, 7
    %v235 = vmul.f32 %v234, %v232
    %v236 = vtanh.pop %v235
    %v237 = vperm.slane %v150, 6
    %v238 = vmul.f32 %v237, %v236
    %v239 = vperm.slane %v150, 5
    %v240 = vadd.f32 %v239, %v238
    %v241 = vmul.f32 %v240, %v232
    %v242 = vadd.f32 %v241, %v148
    %v243 = vperm.slane %v151, 2
    %v244 = vmul.f32 %v243, %v242
    %v245 = vtanh.pop %v244
    %v246 = vperm.slane %v151, 1
    %v247 = vmul.f32 %v246, %v245
    %v248 = vperm.slane %v151, 0
    %v249 = vadd.f32 %v248, %v247
    %v250 = vmul.f32 %v249, %v242
    %s251 = scalar_lea.vmem [#allocation10], 16
    %v252 = vld [vmem:[%s251] sm:$0xff]
    %v253 = vld [vmem:[%s251 + $0x8] sm:$0xff]
    %s254 = scalar_lea.vmem [#allocation7], 128
    %v255 = vld [vmem:[%s254] sm:$0xff]
    %v256 = vld [vmem:[%s254 + $0x8] sm:$0xff]
    %v257 = vld [vmem:[%s254 + $0x10] sm:$0xff]
    %v258 = vld [vmem:[%s254 + $0x18] sm:$0xff]
    %v259 = vld [vmem:[%s254 + $0x20] sm:$0xff]
    %v260 = vld [vmem:[%s254 + $0x28] sm:$0xff]
    %v261 = vld [vmem:[%s254 + $0x30] sm:$0xff]
    %v262 = vld [vmem:[%s254 + $0x38] sm:$0xff]
    %v263 = vld [vmem:[%s254 + $0x40] sm:$0xff]
    %v264 = vld [vmem:[%s254 + $0x48] sm:$0xff]
    %v265 = vld [vmem:[%s254 + $0x50] sm:$0xff]
    %v266 = vld [vmem:[%s254 + $0x58] sm:$0xff]
    %v267 = vld [vmem:[%s254 + $0x60] sm:$0xff]
    %v268 = vld [vmem:[%s254 + $0x68] sm:$0xff]
    %v269 = vld [vmem:[%s254 + $0x70] sm:$0xff]
    %v270 = vld [vmem:[%s254 + $0x78] sm:$0xff]
    %v271 = vperm.slane %v252, 0
    %272 = vmatpush.msra.mxu0 %v270
    %273 = vmatpush.msra.mxu0 %v269
    %274 = vmatpush.msra.mxu0 %v268
    %275 = vmatpush.msra.mxu0 %v267
    %276 = vmatpush.msra.mxu0 %v266
    %277 = vmatpush.msra.mxu0 %v265
    %278 = vmatpush.msra.mxu0 %v264
    %279 = vmatpush.msra.mxu0 %v263
    %280 = vmatpush.msra.mxu0 %v262
    %281 = vmatpush.msra.mxu0 %v261
    %282 = vmatpush.msra.mxu0 %v260
    %283 = vmatpush.msra.mxu0 %v259
    %284 = vmatpush.msra.mxu0 %v258
    %285 = vmatpush.msra.mxu0 %v257
    %286 = vmatpush.msra.mxu0 %v256
    %287 = vmatpush.msra.mxu0 %v255
    %288 = vmatmul.f32.gmra.mxu0 %v250
    %v289 = vpop.f32.mrf.mxu0
    %v290 = vadd.f32 %v271, %v289
    %291 = vdwg.mxu0
    %v292 = vperm.slane %v252, 4
    %v293 = vmul.f32 %v292, %v290
    %v294 = vtanh.pop %v293
    %v295 = vperm.slane %v252, 3
    %v296 = vmul.f32 %v295, %v294
    %v297 = vperm.slane %v252, 2
    %v298 = vadd.f32 %v297, %v296
    %v299 = vmul.f32 %v298, %v290
    %s300 = scalar_lea.vmem [#allocation8], 128
    %v301 = vld [vmem:[%s300] sm:$0xff]
    %v302 = vld [vmem:[%s300 + $0x8] sm:$0xff]
    %v303 = vld [vmem:[%s300 + $0x10] sm:$0xff]
    %v304 = vld [vmem:[%s300 + $0x18] sm:$0xff]
    %v305 = vld [vmem:[%s300 + $0x20] sm:$0xff]
    %v306 = vld [vmem:[%s300 + $0x28] sm:$0xff]
    %v307 = vld [vmem:[%s300 + $0x30] sm:$0xff]
    %v308 = vld [vmem:[%s300 + $0x38] sm:$0xff]
    %v309 = vld [vmem:[%s300 + $0x40] sm:$0xff]
    %v310 = vld [vmem:[%s300 + $0x48] sm:$0xff]
    %v311 = vld [vmem:[%s300 + $0x50] sm:$0xff]
    %v312 = vld [vmem:[%s300 + $0x58] sm:$0xff]
    %v313 = vld [vmem:[%s300 + $0x60] sm:$0xff]
    %v314 = vld [vmem:[%s300 + $0x68] sm:$0xff]
    %v315 = vld [vmem:[%s300 + $0x70] sm:$0xff]
    %v316 = vld [vmem:[%s300 + $0x78] sm:$0xff]
    %v317 = vperm.slane %v252, 1
    %318 = vmatpush.msra.mxu0 %v316
    %319 = vmatpush.msra.mxu0 %v315
    %320 = vmatpush.msra.mxu0 %v314
    %321 = vmatpush.msra.mxu0 %v313
    %322 = vmatpush.msra.mxu0 %v312
    %323 = vmatpush.msra.mxu0 %v311
    %324 = vmatpush.msra.mxu0 %v310
    %325 = vmatpush.msra.mxu0 %v309
    %326 = vmatpush.msra.mxu0 %v308
    %327 = vmatpush.msra.mxu0 %v307
    %328 = vmatpush.msra.mxu0 %v306
    %329 = vmatpush.msra.mxu0 %v305
    %330 = vmatpush.msra.mxu0 %v304
    %331 = vmatpush.msra.mxu0 %v303
    %332 = vmatpush.msra.mxu0 %v302
    %333 = vmatpush.msra.mxu0 %v301
    %334 = vmatmul.f32.gmra.mxu0 %v299
    %v335 = vpop.f32.mrf.mxu0
    %v336 = vadd.f32 %v317, %v335
    %337 = vdwg.mxu0
    %v338 = vperm.slane %v252, 7
    %v339 = vmul.f32 %v338, %v336
    %v340 = vtanh.pop %v339
    %v341 = vperm.slane %v252, 6
    %v342 = vmul.f32 %v341, %v340
    %v343 = vperm.slane %v252, 5
    %v344 = vadd.f32 %v343, %v342
    %v345 = vmul.f32 %v344, %v336
    %v346 = vadd.f32 %v345, %v250
    %v347 = vperm.slane %v253, 2
    %v348 = vmul.f32 %v347, %v346
    %v349 = vtanh.pop %v348
    %v350 = vperm.slane %v253, 1
    %v351 = vmul.f32 %v350, %v349
    %v352 = vperm.slane %v253, 0
    %v353 = vadd.f32 %v352, %v351
    %v354 = vmul.f32 %v353, %v346
    %v355 = vld [vmem:[#allocation11] sm:$0xff]
    %v356 = vld [vmem:[#allocation11 + $0x8] sm:$0xff]
    %v357 = vld [vmem:[#allocation11 + $0x10] sm:$0xff]
    %v358 = vld [vmem:[#allocation11 + $0x18] sm:$0xff]
    %v359 = vld [vmem:[#allocation11 + $0x20] sm:$0xff]
    %v360 = vld [vmem:[#allocation11 + $0x28] sm:$0xff]
    %v361 = vld [vmem:[#allocation11 + $0x30] sm:$0xff]
    %v362 = vld [vmem:[#allocation11 + $0x38] sm:$0xff]
    %v363 = vld [vmem:[#allocation11 + $0x40] sm:$0xff]
    %v364 = vld [vmem:[#allocation11 + $0x48] sm:$0xff]
    %v365 = vld [vmem:[#allocation11 + $0x50] sm:$0xff]
    %v366 = vld [vmem:[#allocation11 + $0x58] sm:$0xff]
    %v367 = vld [vmem:[#allocation11 + $0x60] sm:$0xff]
    %v368 = vld [vmem:[#allocation11 + $0x68] sm:$0xff]
    %v369 = vld [vmem:[#allocation11 + $0x70] sm:$0xff]
    %v370 = vld [vmem:[#allocation11 + $0x78] sm:$0xff]
    %v371 = vld [vmem:[%s7] sm:$0x1]
    %v373 = vperm.slane %v371, 0
    %375 = vmatpush.msra.mxu0 %v370
    %376 = vmatpush.msra.mxu0 %v369
    %377 = vmatpush.msra.mxu0 %v368
    %378 = vmatpush.msra.mxu0 %v367
    %379 = vmatpush.msra.mxu0 %v366
    %380 = vmatpush.msra.mxu0 %v365
    %381 = vmatpush.msra.mxu0 %v364
    %382 = vmatpush.msra.mxu0 %v363
    %383 = vmatpush.msra.mxu0 %v362
    %384 = vmatpush.msra.mxu0 %v361
    %385 = vmatpush.msra.mxu0 %v360
    %386 = vmatpush.msra.mxu0 %v359
    %387 = vmatpush.msra.mxu0 %v358
    %388 = vmatpush.msra.mxu0 %v357
    %389 = vmatpush.msra.mxu0 %v356
    %390 = vmatpush.msra.mxu0 %v355
    %391 = vmatmul.f32.gmra.mxu0 %v354
    %v392 = vpop.f32.mrf.mxu0
    %v393 = vadd.f32 %v373, %v392
    %394 = vdwg.mxu0
    %395 = vst [vmem:[#allocation13] sm:$0xff] %v393
    // Predicated region
    $region58: #{tpu_custom_call.1} parent=1 // pred_check
      _
    $region59: #{tpu_custom_call.1} parent=1 // pred_check_branch
      %397 = sbr.rel (0) target = $region61
    $region60: #{tpu_custom_call.1} parent=1 // pred_region
      %399 = vsyncadd [#allocation4], 0
      %s401 = sshll.u32 [#allocation13], 4
      %s402 = int_to_ptr.vmem [resolvable:$true] %s401
      %s403 = sshll.u32 %s8, 4
      %s404 = int_to_ptr.hbm [resolvable:$true] %s403
      %406 = dma.vmem_to_hbm [thread:$0]  %s402, 128, %s404, [#allocation4]
    $region61: #{tpu_custom_call.1} parent=1 // pred_fallthru
      _
    // Predicated region
    $region62: #{tpu_custom_call.1} parent=1 // pred_check
      _
    $region63: #{tpu_custom_call.1} parent=1 // pred_check_branch
      %408 = sbr.rel (0) target = $region65
    $region64: #{tpu_custom_call.1} parent=1 // pred_region
      %410 = dma.done [#allocation4], 128
    $region65: #{tpu_custom_call.1} parent=1 // pred_fallthru
      _
    %411 = vsyncpa [#allocation3], 1
    %412 = vsyncpa [#allocation6], 1
    %413 = vsyncpa [#allocation9], 1
    %414 = vsyncpa [#allocation12], 1
    %415 = vsyncpa [#allocation4], 1

// kernel: tpu_custom_call.1
$region0: #{tpu_custom_call.1}
  #allocation0 [shape = 'u32[]', space=smem, size = 0x4, offset = 0x4, fixed_abs, tag = 'smem constant byte address 0x4 - core index']
  #allocation1 [shape = 'u32[72,128]{1,0:T(1,128)}', space=vmem, size = 0x9000, scoped, tag = 'internal scratch']
  %s0 = inlined_call_operand.hbm [shape: f32[8,8], index: 0, kind: input, shape index: {}]
  %s1 = inlined_call_operand.hbm [shape: f32[8,128], index: 1, kind: input, shape index: {}]
  %s2 = inlined_call_operand.vmem [shape: f32[1,128], index: 2, kind: input, shape index: {}]
  %s3 = inlined_call_operand.hbm [shape: f32[2,128,128], index: 3, kind: input, shape index: {}]
  %s4 = inlined_call_operand.hbm [shape: f32[2,128,128], index: 4, kind: input, shape index: {}]
  %s5 = inlined_call_operand.hbm [shape: f32[2,16,128], index: 5, kind: input, shape index: {}]
  %s6 = inlined_call_operand.hbm [shape: f32[128,128], index: 6, kind: input, shape index: {}]
  %s7 = inlined_call_operand.vmem [shape: f32[1,128], index: 7, kind: input, shape index: {}]
  %s8 = inlined_call_operand.hbm [shape: f32[8,128], index: 8, kind: output, shape index: {}]
  %s9 = sld [smem:[#allocation0]]
  $region66: #{tpu_custom_call.1} parent=0
    _
  %s11 = ssub.s32 1, %s9
  %s12 = scalar_select 0, %s11, %s9
  $region1: #{tpu_custom_call.1} parent=0
    #allocation2 [shape = 'u8[4096]{0}', space=vmem, size = 0x1000, scoped, tag = 'input window, operand 0, single buffered']
    #allocation3 [shape = 's32[1]{0}', space=sflag, size = 0x4, scoped, tag = 'scoped memory for tpu_custom_call.1']
    #allocation4 [shape = 's32[1]{0}', space=sflag, size = 0x4, scoped, tag = 'scoped memory for tpu_custom_call.1']
    #allocation5 [shape = 'u8[4096]{0}', space=vmem, size = 0x1000, scoped, tag = 'input window, operand 1, single buffered']
    #allocation6 [shape = 's32[1]{0}', space=sflag, size = 0x4, scoped, tag = 'scoped memory for tpu_custom_call.1']
    #allocation7 [shape = 'u8[131072]{0}', space=vmem, size = 0x20000, scoped, tag = 'input window, operand 3, single buffered']
    #allocation8 [shape = 'u8[131072]{0}', space=vmem, size = 0x20000, scoped, tag = 'input window, operand 4, single buffered']
    #allocation9 [shape = 's32[1]{0}', space=sflag, size = 0x4, scoped, tag = 'scoped memory for tpu_custom_call.1']
    #allocation10 [shape = 'u8[16384]{0}', space=vmem, size = 0x4000, scoped, tag = 'input window, operand 5, single buffered']
    #allocation11 [shape = 'u8[65536]{0}', space=vmem, size = 0x10000, scoped, tag = 'input window, operand 6, single buffered']
    #allocation12 [shape = 's32[1]{0}', space=sflag, size = 0x4, scoped, tag = 'scoped memory for tpu_custom_call.1']
    #allocation13 [shape = 'u8[4096]{0}', space=vmem, size = 0x1000, scoped, tag = 'output window, operand 0, single buffered']
    %13 = vsyncpa [#allocation3], 0
    %14 = vsyncpa [#allocation6], 0
    %15 = vsyncpa [#allocation9], 0
    %16 = vsyncpa [#allocation12], 0
    %17 = vsyncpa [#allocation4], 0
    // Predicated region
    $region2: #{tpu_custom_call.1} parent=1 // pred_check
      _
    $region3: #{tpu_custom_call.1} parent=1 // pred_check_branch
      %19 = sbr.rel (0) target = $region5
    $region4: #{tpu_custom_call.1} parent=1 // pred_region
      %21 = vsyncadd [#allocation3], 0
      %s23 = sshll.u32 %s0, 4
      %s24 = int_to_ptr.hbm [resolvable:$true] %s23
      %s25 = sshll.u32 [#allocation2], 4
      %s26 = int_to_ptr.vmem [resolvable:$true] %s25
      %28 = dma.hbm_to_vmem [thread:$0]  %s24, 128, %s26, [#allocation3]
    $region5: #{tpu_custom_call.1} parent=1 // pred_fallthru
      _
    // Predicated region
    $region6: #{tpu_custom_call.1} parent=1 // pred_check
      _
    $region7: #{tpu_custom_call.1} parent=1 // pred_check_branch
      %30 = sbr.rel (0) target = $region9
    $region8: #{tpu_custom_call.1} parent=1 // pred_region
      %32 = vsyncadd [#allocation6], 0
      %s34 = sshll.u32 %s1, 4
      %s35 = int_to_ptr.hbm [resolvable:$true] %s34
      %s36 = sshll.u32 [#allocation5], 4
      %s37 = int_to_ptr.vmem [resolvable:$true] %s36
      %39 = dma.hbm_to_vmem [thread:$0]  %s35, 128, %s37, [#allocation6]
    $region9: #{tpu_custom_call.1} parent=1 // pred_fallthru
      _
    // Predicated region
    $region10: #{tpu_custom_call.1} parent=1 // pred_check
      _
    $region11: #{tpu_custom_call.1} parent=1 // pred_check_branch
      %41 = sbr.rel (0) target = $region13
    $region12: #{tpu_custom_call.1} parent=1 // pred_region
      _
    $region13: #{tpu_custom_call.1} parent=1 // pred_fallthru
      _
    // Predicated region
    $region14: #{tpu_custom_call.1} parent=1 // pred_check
      _
    $region15: #{tpu_custom_call.1} parent=1 // pred_check_branch
      %43 = sbr.rel (0) target = $region17
    $region16: #{tpu_custom_call.1} parent=1 // pred_region
      %45 = vsyncadd [#allocation6], 0
      %s46 = sshll.u32 %s3, 4
      %s47 = int_to_ptr.hbm [resolvable:$true] %s46
      %s48 = sshll.u32 [#allocation7], 4
      %s49 = int_to_ptr.vmem [resolvable:$true] %s48
      %54 = dma.hbm_to_vmem [thread:$0]  %s47, 4096, %s49, [#allocation6], 128, 128, 8
    $region17: #{tpu_custom_call.1} parent=1 // pred_fallthru
      _
    // Predicated region
    $region18: #{tpu_custom_call.1} parent=1 // pred_check
      _
    $region19: #{tpu_custom_call.1} parent=1 // pred_check_branch
      %56 = sbr.rel (0) target = $region21
    $region20: #{tpu_custom_call.1} parent=1 // pred_region
      %58 = vsyncadd [#allocation9], 0
      %s59 = sshll.u32 %s4, 4
      %s60 = int_to_ptr.hbm [resolvable:$true] %s59
      %s61 = sshll.u32 [#allocation8], 4
      %s62 = int_to_ptr.vmem [resolvable:$true] %s61
      %67 = dma.hbm_to_vmem [thread:$0]  %s60, 4096, %s62, [#allocation9], 128, 128, 8
    $region21: #{tpu_custom_call.1} parent=1 // pred_fallthru
      _
    // Predicated region
    $region22: #{tpu_custom_call.1} parent=1 // pred_check
      _
    $region23: #{tpu_custom_call.1} parent=1 // pred_check_branch
      %69 = sbr.rel (0) target = $region25
    $region24: #{tpu_custom_call.1} parent=1 // pred_region
      %71 = vsyncadd [#allocation9], 0
      %s72 = sshll.u32 %s5, 4
      %s73 = int_to_ptr.hbm [resolvable:$true] %s72
      %s74 = sshll.u32 [#allocation10], 4
      %s75 = int_to_ptr.vmem [resolvable:$true] %s74
      %80 = dma.hbm_to_vmem [thread:$0]  %s73, 512, %s75, [#allocation9], 128, 128, 8
    $region25: #{tpu_custom_call.1} parent=1 // pred_fallthru
      _
    // Predicated region
    $region26: #{tpu_custom_call.1} parent=1 // pred_check
      _
    $region27: #{tpu_custom_call.1} parent=1 // pred_check_branch
      %82 = sbr.rel (0) target = $region29
    $region28: #{tpu_custom_call.1} parent=1 // pred_region
      %84 = vsyncadd [#allocation12], 0
      %s85 = sshll.u32 %s6, 4
      %s86 = int_to_ptr.hbm [resolvable:$true] %s85
      %s87 = sshll.u32 [#allocation11], 4
      %s88 = int_to_ptr.vmem [resolvable:$true] %s87
      %93 = dma.hbm_to_vmem [thread:$0]  %s86, 2048, %s88, [#allocation12], 128, 128, 8
    $region29: #{tpu_custom_call.1} parent=1 // pred_fallthru
      _
    // Predicated region
    $region30: #{tpu_custom_call.1} parent=1 // pred_check
      _
    $region31: #{tpu_custom_call.1} parent=1 // pred_check_branch
      %95 = sbr.rel (0) target = $region33
    $region32: #{tpu_custom_call.1} parent=1 // pred_region
      _
    $region33: #{tpu_custom_call.1} parent=1 // pred_fallthru
      _
    // Predicated region
    $region34: #{tpu_custom_call.1} parent=1 // pred_check
      _
    $region35: #{tpu_custom_call.1} parent=1 // pred_check_branch
      %97 = sbr.rel (0) target = $region37
    $region36: #{tpu_custom_call.1} parent=1 // pred_region
      %99 = dma.done [#allocation3], 128
    $region37: #{tpu_custom_call.1} parent=1 // pred_fallthru
      _
    // Predicated region
    $region38: #{tpu_custom_call.1} parent=1 // pred_check
      _
    $region39: #{tpu_custom_call.1} parent=1 // pred_check_branch
      %101 = sbr.rel (0) target = $region41
    $region40: #{tpu_custom_call.1} parent=1 // pred_region
      %103 = dma.done [#allocation6], 128
    $region41: #{tpu_custom_call.1} parent=1 // pred_fallthru
      _
    // Predicated region
    $region42: #{tpu_custom_call.1} parent=1 // pred_check
      _
    $region43: #{tpu_custom_call.1} parent=1 // pred_check_branch
      %105 = sbr.rel (0) target = $region45
    $region44: #{tpu_custom_call.1} parent=1 // pred_region
      %107 = dma.done [#allocation6], 4096
    $region45: #{tpu_custom_call.1} parent=1 // pred_fallthru
      _
    // Predicated region
    $region46: #{tpu_custom_call.1} parent=1 // pred_check
      _
    $region47: #{tpu_custom_call.1} parent=1 // pred_check_branch
      %109 = sbr.rel (0) target = $region49
    $region48: #{tpu_custom_call.1} parent=1 // pred_region
      %111 = dma.done [#allocation9], 4096
    $region49: #{tpu_custom_call.1} parent=1 // pred_fallthru
      _
    // Predicated region
    $region50: #{tpu_custom_call.1} parent=1 // pred_check
      _
    $region51: #{tpu_custom_call.1} parent=1 // pred_check_branch
      %113 = sbr.rel (0) target = $region53
    $region52: #{tpu_custom_call.1} parent=1 // pred_region
      %115 = dma.done [#allocation9], 512
    $region53: #{tpu_custom_call.1} parent=1 // pred_fallthru
      _
    // Predicated region
    $region54: #{tpu_custom_call.1} parent=1 // pred_check
      _
    $region55: #{tpu_custom_call.1} parent=1 // pred_check_branch
      %117 = sbr.rel (0) target = $region57
    $region56: #{tpu_custom_call.1} parent=1 // pred_region
      %119 = dma.done [#allocation12], 2048
    $region57: #{tpu_custom_call.1} parent=1 // pred_fallthru
      _
    %v120 = vld [vmem:[#allocation2] sm:$0xff]
    %v121 = vld [vmem:[#allocation5] sm:$0xff]
    %v122 = vld [vmem:[%s2] sm:$0x1]
    %v124 = vperm.slane %v122, 0
    %vm126 = vcmask 64512
    %v128 = vsel %vm126, %v120, 0
    %130 = vmatpush.msra.mxu0 0.0
    %131 = vmatpush.msra.mxu0 0.0
    %132 = vmatpush.msra.mxu0 0.0
    %133 = vmatpush.msra.mxu0 0.0
    %134 = vmatpush.msra.mxu0 0.0
    %135 = vmatpush.msra.mxu0 0.0
    %136 = vmatpush.msra.mxu0 0.0
    %137 = vmatpush.msra.mxu0 0.0
    %138 = vmatpush.msra.mxu0 0.0
    %139 = vmatpush.msra.mxu0 0.0
    %140 = vmatpush.msra.mxu0 0.0
    %141 = vmatpush.msra.mxu0 0.0
    %142 = vmatpush.msra.mxu0 0.0
    %143 = vmatpush.msra.mxu0 0.0
    %144 = vmatpush.msra.mxu0 0.0
    %145 = vmatpush.msra.mxu0 %v121
    %146 = vmatmul.f32.gmra.mxu0 %v128
    %v147 = vpop.f32.mrf.mxu0
    %v148 = vadd.f32 %v124, %v147
    %149 = vdwg.mxu0
    %v150 = vld [vmem:[#allocation10] sm:$0xff]
    %v151 = vld [vmem:[#allocation10 + $0x8] sm:$0xff]
    %v152 = vld [vmem:[#allocation7] sm:$0xff]
    %v153 = vld [vmem:[#allocation7 + $0x8] sm:$0xff]
    %v154 = vld [vmem:[#allocation7 + $0x10] sm:$0xff]
    %v155 = vld [vmem:[#allocation7 + $0x18] sm:$0xff]
    %v156 = vld [vmem:[#allocation7 + $0x20] sm:$0xff]
    %v157 = vld [vmem:[#allocation7 + $0x28] sm:$0xff]
    %v158 = vld [vmem:[#allocation7 + $0x30] sm:$0xff]
    %v159 = vld [vmem:[#allocation7 + $0x38] sm:$0xff]
    %v160 = vld [vmem:[#allocation7 + $0x40] sm:$0xff]
    %v161 = vld [vmem:[#allocation7 + $0x48] sm:$0xff]
    %v162 = vld [vmem:[#allocation7 + $0x50] sm:$0xff]
    %v163 = vld [vmem:[#allocation7 + $0x58] sm:$0xff]
    %v164 = vld [vmem:[#allocation7 + $0x60] sm:$0xff]
    %v165 = vld [vmem:[#allocation7 + $0x68] sm:$0xff]
    %v166 = vld [vmem:[#allocation7 + $0x70] sm:$0xff]
    %v167 = vld [vmem:[#allocation7 + $0x78] sm:$0xff]
    %v168 = vperm.slane %v150, 0
    %169 = vmatpush.msra.mxu0 %v167
    %170 = vmatpush.msra.mxu0 %v166
    %171 = vmatpush.msra.mxu0 %v165
    %172 = vmatpush.msra.mxu0 %v164
    %173 = vmatpush.msra.mxu0 %v163
    %174 = vmatpush.msra.mxu0 %v162
    %175 = vmatpush.msra.mxu0 %v161
    %176 = vmatpush.msra.mxu0 %v160
    %177 = vmatpush.msra.mxu0 %v159
    %178 = vmatpush.msra.mxu0 %v158
    %179 = vmatpush.msra.mxu0 %v157
    %180 = vmatpush.msra.mxu0 %v156
    %181 = vmatpush.msra.mxu0 %v155
    %182 = vmatpush.msra.mxu0 %v154
    %183 = vmatpush.msra.mxu0 %v153
    %184 = vmatpush.msra.mxu0 %v152
    %185 = vmatmul.f32.gmra.mxu0 %v148
    %v186 = vpop.f32.mrf.mxu0
    %v187 = vadd.f32 %v168, %v186
    %188 = vdwg.mxu0
    %v189 = vperm.slane %v150, 4
    %v190 = vmul.f32 %v189, %v187
    %v191 = vtanh.pop %v190
    %v192 = vperm.slane %v150, 3
    %v193 = vmul.f32 %v192, %v191
    %v194 = vperm.slane %v150, 2
    %v195 = vadd.f32 %v194, %v193
    %v196 = vmul.f32 %v195, %v187
    %v197 = vld [vmem:[#allocation8] sm:$0xff]
    %v198 = vld [vmem:[#allocation8 + $0x8] sm:$0xff]
    %v199 = vld [vmem:[#allocation8 + $0x10] sm:$0xff]
    %v200 = vld [vmem:[#allocation8 + $0x18] sm:$0xff]
    %v201 = vld [vmem:[#allocation8 + $0x20] sm:$0xff]
    %v202 = vld [vmem:[#allocation8 + $0x28] sm:$0xff]
    %v203 = vld [vmem:[#allocation8 + $0x30] sm:$0xff]
    %v204 = vld [vmem:[#allocation8 + $0x38] sm:$0xff]
    %v205 = vld [vmem:[#allocation8 + $0x40] sm:$0xff]
    %v206 = vld [vmem:[#allocation8 + $0x48] sm:$0xff]
    %v207 = vld [vmem:[#allocation8 + $0x50] sm:$0xff]
    %v208 = vld [vmem:[#allocation8 + $0x58] sm:$0xff]
    %v209 = vld [vmem:[#allocation8 + $0x60] sm:$0xff]
    %v210 = vld [vmem:[#allocation8 + $0x68] sm:$0xff]
    %v211 = vld [vmem:[#allocation8 + $0x70] sm:$0xff]
    %v212 = vld [vmem:[#allocation8 + $0x78] sm:$0xff]
    %v213 = vperm.slane %v150, 1
    %214 = vmatpush.msra.mxu0 %v212
    %215 = vmatpush.msra.mxu0 %v211
    %216 = vmatpush.msra.mxu0 %v210
    %217 = vmatpush.msra.mxu0 %v209
    %218 = vmatpush.msra.mxu0 %v208
    %219 = vmatpush.msra.mxu0 %v207
    %220 = vmatpush.msra.mxu0 %v206
    %221 = vmatpush.msra.mxu0 %v205
    %222 = vmatpush.msra.mxu0 %v204
    %223 = vmatpush.msra.mxu0 %v203
    %224 = vmatpush.msra.mxu0 %v202
    %225 = vmatpush.msra.mxu0 %v201
    %226 = vmatpush.msra.mxu0 %v200
    %227 = vmatpush.msra.mxu0 %v199
    %228 = vmatpush.msra.mxu0 %v198
    %229 = vmatpush.msra.mxu0 %v197
    %230 = vmatmul.f32.gmra.mxu0 %v196
    %v231 = vpop.f32.mrf.mxu0
    %v232 = vadd.f32 %v213, %v231
    %233 = vdwg.mxu0
    %v234 = vperm.slane %v150, 7
    %v235 = vmul.f32 %v234, %v232
    %v236 = vtanh.pop %v235
    %v237 = vperm.slane %v150, 6
    %v238 = vmul.f32 %v237, %v236
    %v239 = vperm.slane %v150, 5
    %v240 = vadd.f32 %v239, %v238
    %v241 = vmul.f32 %v240, %v232
    %v242 = vadd.f32 %v241, %v148
    %v243 = vperm.slane %v151, 2
    %v244 = vmul.f32 %v243, %v242
    %v245 = vtanh.pop %v244
    %v246 = vperm.slane %v151, 1
    %v247 = vmul.f32 %v246, %v245
    %v248 = vperm.slane %v151, 0
    %v249 = vadd.f32 %v248, %v247
    %v250 = vmul.f32 %v249, %v242
    %s251 = scalar_lea.vmem [#allocation10], 16
    %v252 = vld [vmem:[%s251] sm:$0xff]
    %v253 = vld [vmem:[%s251 + $0x8] sm:$0xff]
    %s254 = scalar_lea.vmem [#allocation7], 128
    %v255 = vld [vmem:[%s254] sm:$0xff]
    %v256 = vld [vmem:[%s254 + $0x8] sm:$0xff]
    %v257 = vld [vmem:[%s254 + $0x10] sm:$0xff]
    %v258 = vld [vmem:[%s254 + $0x18] sm:$0xff]
    %v259 = vld [vmem:[%s254 + $0x20] sm:$0xff]
    %v260 = vld [vmem:[%s254 + $0x28] sm:$0xff]
    %v261 = vld [vmem:[%s254 + $0x30] sm:$0xff]
    %v262 = vld [vmem:[%s254 + $0x38] sm:$0xff]
    %v263 = vld [vmem:[%s254 + $0x40] sm:$0xff]
    %v264 = vld [vmem:[%s254 + $0x48] sm:$0xff]
    %v265 = vld [vmem:[%s254 + $0x50] sm:$0xff]
    %v266 = vld [vmem:[%s254 + $0x58] sm:$0xff]
    %v267 = vld [vmem:[%s254 + $0x60] sm:$0xff]
    %v268 = vld [vmem:[%s254 + $0x68] sm:$0xff]
    %v269 = vld [vmem:[%s254 + $0x70] sm:$0xff]
    %v270 = vld [vmem:[%s254 + $0x78] sm:$0xff]
    %v271 = vperm.slane %v252, 0
    %272 = vmatpush.msra.mxu0 %v270
    %273 = vmatpush.msra.mxu0 %v269
    %274 = vmatpush.msra.mxu0 %v268
    %275 = vmatpush.msra.mxu0 %v267
    %276 = vmatpush.msra.mxu0 %v266
    %277 = vmatpush.msra.mxu0 %v265
    %278 = vmatpush.msra.mxu0 %v264
    %279 = vmatpush.msra.mxu0 %v263
    %280 = vmatpush.msra.mxu0 %v262
    %281 = vmatpush.msra.mxu0 %v261
    %282 = vmatpush.msra.mxu0 %v260
    %283 = vmatpush.msra.mxu0 %v259
    %284 = vmatpush.msra.mxu0 %v258
    %285 = vmatpush.msra.mxu0 %v257
    %286 = vmatpush.msra.mxu0 %v256
    %287 = vmatpush.msra.mxu0 %v255
    %288 = vmatmul.f32.gmra.mxu0 %v250
    %v289 = vpop.f32.mrf.mxu0
    %v290 = vadd.f32 %v271, %v289
    %291 = vdwg.mxu0
    %v292 = vperm.slane %v252, 4
    %v293 = vmul.f32 %v292, %v290
    %v294 = vtanh.pop %v293
    %v295 = vperm.slane %v252, 3
    %v296 = vmul.f32 %v295, %v294
    %v297 = vperm.slane %v252, 2
    %v298 = vadd.f32 %v297, %v296
    %v299 = vmul.f32 %v298, %v290
    %s300 = scalar_lea.vmem [#allocation8], 128
    %v301 = vld [vmem:[%s300] sm:$0xff]
    %v302 = vld [vmem:[%s300 + $0x8] sm:$0xff]
    %v303 = vld [vmem:[%s300 + $0x10] sm:$0xff]
    %v304 = vld [vmem:[%s300 + $0x18] sm:$0xff]
    %v305 = vld [vmem:[%s300 + $0x20] sm:$0xff]
    %v306 = vld [vmem:[%s300 + $0x28] sm:$0xff]
    %v307 = vld [vmem:[%s300 + $0x30] sm:$0xff]
    %v308 = vld [vmem:[%s300 + $0x38] sm:$0xff]
    %v309 = vld [vmem:[%s300 + $0x40] sm:$0xff]
    %v310 = vld [vmem:[%s300 + $0x48] sm:$0xff]
    %v311 = vld [vmem:[%s300 + $0x50] sm:$0xff]
    %v312 = vld [vmem:[%s300 + $0x58] sm:$0xff]
    %v313 = vld [vmem:[%s300 + $0x60] sm:$0xff]
    %v314 = vld [vmem:[%s300 + $0x68] sm:$0xff]
    %v315 = vld [vmem:[%s300 + $0x70] sm:$0xff]
    %v316 = vld [vmem:[%s300 + $0x78] sm:$0xff]
    %v317 = vperm.slane %v252, 1
    %318 = vmatpush.msra.mxu0 %v316
    %319 = vmatpush.msra.mxu0 %v315
    %320 = vmatpush.msra.mxu0 %v314
    %321 = vmatpush.msra.mxu0 %v313
    %322 = vmatpush.msra.mxu0 %v312
    %323 = vmatpush.msra.mxu0 %v311
    %324 = vmatpush.msra.mxu0 %v310
    %325 = vmatpush.msra.mxu0 %v309
    %326 = vmatpush.msra.mxu0 %v308
    %327 = vmatpush.msra.mxu0 %v307
    %328 = vmatpush.msra.mxu0 %v306
    %329 = vmatpush.msra.mxu0 %v305
    %330 = vmatpush.msra.mxu0 %v304
    %331 = vmatpush.msra.mxu0 %v303
    %332 = vmatpush.msra.mxu0 %v302
    %333 = vmatpush.msra.mxu0 %v301
    %334 = vmatmul.f32.gmra.mxu0 %v299
    %v335 = vpop.f32.mrf.mxu0
    %v336 = vadd.f32 %v317, %v335
    %337 = vdwg.mxu0
    %v338 = vperm.slane %v252, 7
    %v339 = vmul.f32 %v338, %v336
    %v340 = vtanh.pop %v339
    %v341 = vperm.slane %v252, 6
    %v342 = vmul.f32 %v341, %v340
    %v343 = vperm.slane %v252, 5
    %v344 = vadd.f32 %v343, %v342
    %v345 = vmul.f32 %v344, %v336
    %v346 = vadd.f32 %v345, %v250
    %v347 = vperm.slane %v253, 2
    %v348 = vmul.f32 %v347, %v346
    %v349 = vtanh.pop %v348
    %v350 = vperm.slane %v253, 1
    %v351 = vmul.f32 %v350, %v349
    %v352 = vperm.slane %v253, 0
    %v353 = vadd.f32 %v352, %v351
    %v354 = vmul.f32 %v353, %v346
    %v355 = vld [vmem:[#allocation11] sm:$0xff]
    %v356 = vld [vmem:[#allocation11 + $0x8] sm:$0xff]
    %v357 = vld [vmem:[#allocation11 + $0x10] sm:$0xff]
    %v358 = vld [vmem:[#allocation11 + $0x18] sm:$0xff]
    %v359 = vld [vmem:[#allocation11 + $0x20] sm:$0xff]
    %v360 = vld [vmem:[#allocation11 + $0x28] sm:$0xff]
    %v361 = vld [vmem:[#allocation11 + $0x30] sm:$0xff]
    %v362 = vld [vmem:[#allocation11 + $0x38] sm:$0xff]
    %v363 = vld [vmem:[#allocation11 + $0x40] sm:$0xff]
    %v364 = vld [vmem:[#allocation11 + $0x48] sm:$0xff]
    %v365 = vld [vmem:[#allocation11 + $0x50] sm:$0xff]
    %v366 = vld [vmem:[#allocation11 + $0x58] sm:$0xff]
    %v367 = vld [vmem:[#allocation11 + $0x60] sm:$0xff]
    %v368 = vld [vmem:[#allocation11 + $0x68] sm:$0xff]
    %v369 = vld [vmem:[#allocation11 + $0x70] sm:$0xff]
    %v370 = vld [vmem:[#allocation11 + $0x78] sm:$0xff]
    %v371 = vld [vmem:[%s7] sm:$0x1]
    %v373 = vperm.slane %v371, 0
    %375 = vmatpush.msra.mxu0 %v370
    %376 = vmatpush.msra.mxu0 %v369
    %377 = vmatpush.msra.mxu0 %v368
    %378 = vmatpush.msra.mxu0 %v367
    %379 = vmatpush.msra.mxu0 %v366
    %380 = vmatpush.msra.mxu0 %v365
    %381 = vmatpush.msra.mxu0 %v364
    %382 = vmatpush.msra.mxu0 %v363
    %383 = vmatpush.msra.mxu0 %v362
    %384 = vmatpush.msra.mxu0 %v361
    %385 = vmatpush.msra.mxu0 %v360
    %386 = vmatpush.msra.mxu0 %v359
    %387 = vmatpush.msra.mxu0 %v358
    %388 = vmatpush.msra.mxu0 %v357
    %389 = vmatpush.msra.mxu0 %v356
    %390 = vmatpush.msra.mxu0 %v355
    %391 = vmatmul.f32.gmra.mxu0 %v354
    %v392 = vpop.f32.mrf.mxu0
    %v393 = vadd.f32 %v373, %v392
    %394 = vdwg.mxu0
    %395 = vst [vmem:[#allocation13] sm:$0xff] %v393
    // Predicated region
    $region58: #{tpu_custom_call.1} parent=1 // pred_check
      _
    $region59: #{tpu_custom_call.1} parent=1 // pred_check_branch
      %397 = sbr.rel (0) target = $region61
    $region60: #{tpu_custom_call.1} parent=1 // pred_region
      %399 = vsyncadd [#allocation4], 0
      %s401 = sshll.u32 [#allocation13], 4
      %s402 = int_to_ptr.vmem [resolvable:$true] %s401
      %s403 = sshll.u32 %s8, 4
      %s404 = int_to_ptr.hbm [resolvable:$true] %s403
      %406 = dma.vmem_to_hbm [thread:$0]  %s402, 128, %s404, [#allocation4]
    $region61: #{tpu_custom_call.1} parent=1 // pred_fallthru
      _
    // Predicated region
    $region62: #{tpu_custom_call.1} parent=1 // pred_check
      _
    $region63: #{tpu_custom_call.1} parent=1 // pred_check_branch
      %408 = sbr.rel (0) target = $region65
    $region64: #{tpu_custom_call.1} parent=1 // pred_region
      %410 = dma.done [#allocation4], 128
    $region65: #{tpu_custom_call.1} parent=1 // pred_fallthru
      _
    %411 = vsyncpa [#allocation3], 1
    %412 = vsyncpa [#allocation6], 1
    %413 = vsyncpa [#allocation9], 1
    %414 = vsyncpa [#allocation12], 1
    %415 = vsyncpa [#allocation4], 1

</llo_original>
